<compile_context>
chip_gen: v7x
topology: tpu7x:2x2x1
jax: 0.10.0
libtpu: 0.0.40
codegen_flags: <defaults>
</compile_context>

<pallas_src>
import functools

import jax
import jax.numpy as jnp
from jax.experimental import pallas as pl
from jax.experimental.pallas import tpu as pltpu


# --------------------------------- the kernel --------------------------------

def fused_kernel(idx_ref, lane_ref, table_ref, w1_ref, b1_ref, b2_ref, b3_ref,
                 w2_hbm, w3_hbm, out_ref, w2_vmem, w3_vmem, copy_sem, *,
                 b_sz, compute_dtype):
    """Embedding + 2x (3x3 conv + ReLU) + Linear + ReLU, fully in VMEM.

    idx_ref:   (H*B, W*V) int32  -- modified_index repeated V times along lanes
    lane_ref:  (1, W*V)   int32  -- precomputed lane pattern [0..V-1]*W
    table_ref: (W*V, W*E) bf16   -- kron(I_W, embedding_table)
    w1_ref:    (3, W*E,  W*C1) bf16 -- banded conv1 weight, one slab per dy
    b1_ref:    (1, W*C1) f32
    w2_hbm:    (3, W*C1, W*C2) bf16 in HBM (manually DMA'd -> w2_vmem)
    b2_ref:    (1, W*C2) f32
    w3_hbm:    (H*W*C2, D) bf16 in HBM (manually DMA'd -> w3_vmem)
    b3_ref:    (1, D) f32
    out_ref:   (B, D) f32
    """
    # Kick off the big-weight DMAs immediately so they overlap embedding + conv1.
    cp2 = pltpu.make_async_copy(w2_hbm, w2_vmem, copy_sem.at[0])
    cp3 = pltpu.make_async_copy(w3_hbm, w3_vmem, copy_sem.at[1])
    cp2.start()
    cp3.start()

    r_sz = idx_ref.shape[0]            # H * B
    h_sz = r_sz // b_sz                # H

    # ---- embedding lookup: one-hot(idx) @ block-diag(table) on the MXU ----
    onehot = (idx_ref[...] == lane_ref[...]).astype(compute_dtype)   # (H*B, W*V)
    feat = jnp.dot(onehot, table_ref[...],
                   preferred_element_type=jnp.float32)                # (H*B, W*E)
    feat = feat.astype(compute_dtype)

    # sublane(row)-only zero-filled shift: out[r, :] = x[r + s, :] (zero outside)
    def row_shift(x, s):
        if s == 0:
            return x
        rows, cols = x.shape
        z = jnp.zeros((abs(s), cols), x.dtype)
        if s > 0:
            return jnp.concatenate([x[s:, :], z], axis=0)
        return jnp.concatenate([z, x[:rows + s, :]], axis=0)

    # 3x3 same-padding conv = 3 banded matmuls (one per dy), f32 acc + ReLU.
    def conv3x3(f_bf, w_ref, b_row):
        acc = None
        for t, dy in enumerate((-1, 0, 1)):
            part = jnp.dot(row_shift(f_bf, dy * b_sz), w_ref[t],
                           preferred_element_type=jnp.float32)
            acc = part if acc is None else acc + part
        return jnp.maximum(acc + b_row, 0.0).astype(compute_dtype)

    h1 = conv3x3(feat, w1_ref, b1_ref[...])        # (H*B, W*C1) bf16
    cp2.wait()                                     # conv2 weight ready
    h2 = conv3x3(h1, w2_vmem, b2_ref[...])         # (H*B, W*C2) bf16
    cp3.wait()                                     # FC weight ready

    # ---- final Linear: one (B, H*W*C2) x (H*W*C2, D) matmul ----
    # Re-pack the y-interleaved slab into per-batch rows by lane-tile-aligned
    # concatenation: flat[b, y*(W*C2) + x*C2 + c] = h2[y*B+b, x*C2+c].
    flat = jnp.concatenate(
        [h2[y * b_sz:(y + 1) * b_sz, :] for y in range(h_sz)], axis=1)
    out = jnp.dot(flat, w3_vmem[...], preferred_element_type=jnp.float32)
    out_ref[...] = jnp.maximum(out + b3_ref[...], 0.0)


# ----------------------------- offline weight prep ---------------------------

def prepare_params(emb_table, w1, b1, w2, b2, w3, b3, *, grid_h, grid_w,
                   compute_dtype=jnp.bfloat16):
    """One-time rearrangement of torch-layout parameters into kernel layouts."""
    v, e = emb_table.shape
    c1 = w1.shape[0]
    c2 = w2.shape[0]
    d_out = w3.shape[1]
    eye_w = jnp.eye(grid_w, dtype=jnp.float32)

    table_bd = jnp.kron(eye_w, emb_table).astype(compute_dtype)       # (W*V, W*E)

    # (Cout, Cin, 3, 3) -> (3, W*Cin, W*Cout): one banded matrix per dy; the dx
    # taps live on the off-diagonals, whose missing boundary rows realize the
    # conv's x zero padding.
    def expand_conv_banded(wc):
        cout, cin = wc.shape[0], wc.shape[1]
        bands = []
        for ky in range(3):                        # ky = dy + 1
            acc = jnp.zeros((grid_w * cin, grid_w * cout), jnp.float32)
            for kx in range(3):                    # kx = dx + 1
                dx = kx - 1
                p_dx = jnp.eye(grid_w, k=-dx, dtype=jnp.float32)   # x_in = x_out+dx
                acc = acc + jnp.kron(p_dx, wc[:, :, ky, kx].T)
            bands.append(acc)
        return jnp.stack(bands).astype(compute_dtype)

    w1band = expand_conv_banded(w1)                                    # (3, W*E, W*C1)
    w2band = expand_conv_banded(w2)                                    # (3, W*C1, W*C2)
    b1row = jnp.tile(b1, grid_w).reshape(1, grid_w * c1).astype(jnp.float32)
    b2row = jnp.tile(b2, grid_w).reshape(1, grid_w * c2).astype(jnp.float32)

    # torch flatten row order is (c, y, x); kernel wants (y, x, c), pre-flattened.
    w3flat = (w3.reshape(c2, grid_h, grid_w, d_out)
                .transpose(1, 2, 0, 3)
                .reshape(grid_h * grid_w * c2, d_out)
                .astype(compute_dtype))
    b3row = b3.reshape(1, d_out).astype(jnp.float32)

    lane_pat = jnp.tile(jnp.arange(v, dtype=jnp.int32),
                        grid_w).reshape(1, grid_w * v)

    return dict(table_bd=table_bd, lane_pat=lane_pat,
                w1band=w1band, b1row=b1row,
                w2band=w2band, b2row=b2row,
                w3flat=w3flat, b3row=b3row,
                meta=dict(v=v, e=e, c1=c1, c2=c2, d_out=d_out))


# --------------------------------- forward -----------------------------------

def grid_feature_extractor(x, prepared, *, t, s, compute_dtype=jnp.bfloat16):
    """x: (B, H, W, 3) int32 grid observation. Returns (B, cnn_output_dim) f32."""
    b_sz, h_sz, w_sz, _ = x.shape
    m = prepared['meta']
    v, d_out = m['v'], m['d_out']

    # modified_index = x0 + x1*T + x2*T*S  (tiny int math; done wrapper-side)
    idx = (x[..., 0] + x[..., 1] * t + x[..., 2] * (t * s)).astype(jnp.int32)
    idx_rows = jnp.transpose(idx, (1, 0, 2)).reshape(h_sz * b_sz, w_sz)  # row = y*B+b
    idx_exp = jnp.repeat(idx_rows, v, axis=1)                            # (H*B, W*V)
    # TODO(synk): for large batches, pass idx_rows un-repeated and expand in-kernel
    #   to avoid the V-fold index HBM traffic; negligible at B=2.

    vmem_args = (idx_exp, prepared['lane_pat'], prepared['table_bd'],
                 prepared['w1band'], prepared['b1row'], prepared['b2row'],
                 prepared['b3row'])
    hbm_args = (prepared['w2band'], prepared['w3flat'])   # manually DMA'd in-kernel

    def full_spec(a):
        nd = a.ndim
        return pl.BlockSpec(a.shape, lambda i, _nd=nd: (0,) * _nd)

    in_specs = ([full_spec(a) for a in vmem_args]
                + [pl.BlockSpec(memory_space=pl.ANY)] * len(hbm_args))

    kernel = functools.partial(fused_kernel, b_sz=b_sz, compute_dtype=compute_dtype)
    return pl.pallas_call(
        kernel,
        out_shape=jax.ShapeDtypeStruct((b_sz, d_out), jnp.float32),
        grid=(1,),
        in_specs=in_specs,
        out_specs=pl.BlockSpec((b_sz, d_out), lambda i: (0, 0)),
        scratch_shapes=[pltpu.VMEM(prepared['w2band'].shape, compute_dtype),
                        pltpu.VMEM(prepared['w3flat'].shape, compute_dtype),
                        pltpu.SemaphoreType.DMA((2,))],
        compiler_params=pltpu.CompilerParams(
            dimension_semantics=("arbitrary",),
            vmem_limit_bytes=32 * 1024 * 1024),
    )(*vmem_args, *hbm_args)


# -------------------------------- reference ----------------------------------

def reference_forward(x, raw_params, *, t, s):
    """Plain-JAX f32 reference built directly from torch-layout parameters."""
    emb_table, w1, b1, w2, b2, w3, b3 = raw_params
    b_sz = x.shape[0]
    idx = x[..., 0] + x[..., 1] * t + x[..., 2] * (t * s)
    feat = emb_table[idx]                                       # (B, H, W, E)

    def conv3x3(f, wt, bt):
        hh, ww = f.shape[1], f.shape[2]
        fp = jnp.pad(f, ((0, 0), (1, 1), (1, 1), (0, 0)))
        out = jnp.zeros(f.shape[:3] + (wt.shape[0],), jnp.float32)
        for ky in range(3):
            for kx in range(3):
                out = out + jnp.einsum('bhwc,oc->bhwo',
                                       fp[:, ky:ky + hh, kx:kx + ww, :],
                                       wt[:, :, ky, kx])
        return jnp.maximum(out + bt, 0.0)

    h1 = conv3x3(feat, w1, b1)
    h2 = conv3x3(h1, w2, b2)
    flat = jnp.transpose(h2, (0, 3, 1, 2)).reshape(b_sz, -1)    # NCHW flatten
    return jnp.maximum(flat @ w3 + b3, 0.0)


# ----------------------------------- main -------------------------------------

if __name__ == "__main__":
    # module hyper-params
    T, S, C = 4, 2, 2                 # grid cell types / states per type / colors
    V = T * S * C                     # embedding vocabulary
    E = 8                             # config['embedding_dim']
    D_OUT = 64                        # config['output_dim'] (cnn_output_dim)
    B, H, W = 2, 8, 8                 # batch, grid height, grid width
    C1, C2 = 16, 32                   # assumed CNN channel widths

    key = jax.random.PRNGKey(0)
    (k_a, k_b, k_c, k_emb, k_w1, k_b1, k_w2, k_b2, k_w3, k_b3) = jax.random.split(key, 10)

    # observation: (B, H, W, 3) integer components
    x = jnp.stack(
        [jax.random.randint(k_a, (B, H, W), 0, T),
         jax.random.randint(k_b, (B, H, W), 0, S),
         jax.random.randint(k_c, (B, H, W), 0, C)],
        axis=-1).astype(jnp.int32)

    # deterministic synthetic parameters (torch layouts)
    emb_table = 0.1 * jax.random.normal(k_emb, (V, E), jnp.float32)
    w1 = 0.1 * jax.random.normal(k_w1, (C1, E, 3, 3), jnp.float32)
    b1 = 0.1 * jax.random.normal(k_b1, (C1,), jnp.float32)
    w2 = 0.1 * jax.random.normal(k_w2, (C2, C1, 3, 3), jnp.float32)
    b2 = 0.1 * jax.random.normal(k_b2, (C2,), jnp.float32)
    w3 = 0.05 * jax.random.normal(k_w3, (C2 * H * W, D_OUT), jnp.float32)
    b3 = 0.1 * jax.random.normal(k_b3, (D_OUT,), jnp.float32)

    prepared = prepare_params(emb_table, w1, b1, w2, b2, w3, b3, grid_h=H, grid_w=W)

    fwd = jax.jit(lambda obs: grid_feature_extractor(obs, prepared, t=T, s=S))
    out = jax.block_until_ready(fwd(x))
    assert out.shape == (B, D_OUT) and out.dtype == jnp.float32

    ref = jax.block_until_ready(
        reference_forward(x, (emb_table, w1, b1, w2, b2, w3, b3), t=T, s=S))
    assert jnp.allclose(out, ref, rtol=2e-2, atol=2e-2), "mismatch vs JAX reference"

    print("KERNEL_OK")
</pallas_src>

<mosaic_0001>
module attributes {stable_mosaic.version = 11 : i64} {
  func.func @fused_kernel(%arg0: i32, %arg1: memref<16x128xi32, #tpu.memory_space<vmem>>, %arg2: memref<1x128xi32, #tpu.memory_space<vmem>>, %arg3: memref<128x64xbf16, #tpu.memory_space<vmem>>, %arg4: memref<3x64x128xbf16, #tpu.memory_space<vmem>>, %arg5: memref<1x128xf32, #tpu.memory_space<vmem>>, %arg6: memref<1x256xf32, #tpu.memory_space<vmem>>, %arg7: memref<1x64xf32, #tpu.memory_space<vmem>>, %arg8: memref<3x128x256xbf16, #tpu.memory_space<any>>, %arg9: memref<2048x64xbf16, #tpu.memory_space<any>>, %arg10: memref<2x64xf32, #tpu.memory_space<vmem>>, %arg11: memref<3x128x256xbf16, #tpu.memory_space<vmem>>, %arg12: memref<2048x64xbf16, #tpu.memory_space<vmem>>, %arg13: memref<2x!tpu.dma_semaphore, #tpu.memory_space<semaphore_mem>>) attributes {dimension_semantics = [#tpu.dimension_semantics<arbitrary>], iteration_bounds = array<i64: 1>, scalar_prefetch = 0 : i64, scratch_operands = 3 : i64, tpu.core_type = #tpu.core_type<tc>, window_params = [{pipeline_mode = #tpu.pipeline_mode<synchronous>, transform_indices = @transform_0, window_bounds = array<i64: 16, 128>}, {pipeline_mode = #tpu.pipeline_mode<synchronous>, transform_indices = @transform_1, window_bounds = array<i64: 1, 128>}, {pipeline_mode = #tpu.pipeline_mode<synchronous>, transform_indices = @transform_2, window_bounds = array<i64: 128, 64>}, {pipeline_mode = #tpu.pipeline_mode<synchronous>, transform_indices = @transform_3, window_bounds = array<i64: 3, 64, 128>}, {pipeline_mode = #tpu.pipeline_mode<synchronous>, transform_indices = @transform_4, window_bounds = array<i64: 1, 128>}, {pipeline_mode = #tpu.pipeline_mode<synchronous>, transform_indices = @transform_5, window_bounds = array<i64: 1, 256>}, {pipeline_mode = #tpu.pipeline_mode<synchronous>, transform_indices = @transform_6, window_bounds = array<i64: 1, 64>}, {}, {}, {pipeline_mode = #tpu.pipeline_mode<synchronous>, transform_indices = @transform_9, window_bounds = array<i64: 2, 64>}]} {
    %c0_i32 = arith.constant 0 : i32
    %0 = tpu.memref_slice %arg13[%c0_i32] : memref<2x!tpu.dma_semaphore, #tpu.memory_space<semaphore_mem>> -> memref<1x!tpu.dma_semaphore, #tpu.memory_space<semaphore_mem>>
    %1 = tpu.memref_squeeze %0 : memref<1x!tpu.dma_semaphore, #tpu.memory_space<semaphore_mem>> -> memref<!tpu.dma_semaphore, #tpu.memory_space<semaphore_mem>>
    tpu.enqueue_dma source(%arg8 : memref<3x128x256xbf16, #tpu.memory_space<any>>) target(%arg11 : memref<3x128x256xbf16, #tpu.memory_space<vmem>>) target_semaphore(%1 : memref<!tpu.dma_semaphore, #tpu.memory_space<semaphore_mem>>)
    %c1_i32 = arith.constant 1 : i32
    %2 = tpu.memref_slice %arg13[%c1_i32] : memref<2x!tpu.dma_semaphore, #tpu.memory_space<semaphore_mem>> -> memref<1x!tpu.dma_semaphore, #tpu.memory_space<semaphore_mem>>
    %3 = tpu.memref_squeeze %2 : memref<1x!tpu.dma_semaphore, #tpu.memory_space<semaphore_mem>> -> memref<!tpu.dma_semaphore, #tpu.memory_space<semaphore_mem>>
    tpu.enqueue_dma source(%arg9 : memref<2048x64xbf16, #tpu.memory_space<any>>) target(%arg12 : memref<2048x64xbf16, #tpu.memory_space<vmem>>) target_semaphore(%3 : memref<!tpu.dma_semaphore, #tpu.memory_space<semaphore_mem>>)
    %c0 = arith.constant 0 : index
    %c0_0 = arith.constant 0 : index
    %4 = vector.load %arg1[%c0, %c0_0] : memref<16x128xi32, #tpu.memory_space<vmem>>, vector<16x128xi32>
    %c0_1 = arith.constant 0 : index
    %c0_2 = arith.constant 0 : index
    %5 = vector.load %arg2[%c0_1, %c0_2] : memref<1x128xi32, #tpu.memory_space<vmem>>, vector<1x128xi32>
    %6 = vector.broadcast %5 : vector<1x128xi32> to vector<16x128xi32>
    %7 = arith.cmpi eq, %4, %6 : vector<16x128xi32>
    %8 = arith.extui %7 : vector<16x128xi1> to vector<16x128xi32>
    %9 = arith.sitofp %8 : vector<16x128xi32> to vector<16x128xf32>
    %10 = arith.truncf %9 : vector<16x128xf32> to vector<16x128xbf16>
    %c0_3 = arith.constant 0 : index
    %c0_4 = arith.constant 0 : index
    %11 = vector.load %arg3[%c0_3, %c0_4] : memref<128x64xbf16, #tpu.memory_space<vmem>>, vector<128x64xbf16>
    %cst = arith.constant dense<0.000000e+00> : vector<16x64xf32>
    %12 = tpu.matmul %10, %11, %cst {dimension_numbers = #tpu.dot_dimension_numbers<[1], [0], [0], [1], [0, 0, 1, 1], [], []>} : vector<16x128xbf16>, vector<128x64xbf16>, vector<16x64xf32> -> vector<16x64xf32>
    %13 = arith.truncf %12 : vector<16x64xf32> to vector<16x64xbf16>
    %c0_5 = arith.constant 0 : index
    %c0_6 = arith.constant 0 : index
    %14 = vector.load %arg5[%c0_5, %c0_6] : memref<1x128xf32, #tpu.memory_space<vmem>>, vector<1x128xf32>
    %cst_7 = arith.constant 0.000000e+00 : bf16
    %15 = vector.broadcast %cst_7 : bf16 to vector<2x64xbf16>
    %16 = vector.extract_strided_slice %13 {offsets = [0, 0], sizes = [14, 64], strides = [1, 1]} : vector<16x64xbf16> to vector<14x64xbf16>
    %17 = tpu.concatenate %15, %16 in 0 : vector<2x64xbf16>, vector<14x64xbf16> -> vector<16x64xbf16>
    %c0_8 = arith.constant 0 : index
    %c0_9 = arith.constant 0 : index
    %c0_10 = arith.constant 0 : index
    %18 = vector.load %arg4[%c0_8, %c0_9, %c0_10] : memref<3x64x128xbf16, #tpu.memory_space<vmem>>, vector<1x64x128xbf16>
    %19 = vector.shape_cast %18 : vector<1x64x128xbf16> to vector<64x128xbf16>
    %cst_11 = arith.constant dense<0.000000e+00> : vector<16x128xf32>
    %20 = tpu.matmul %17, %19, %cst_11 {dimension_numbers = #tpu.dot_dimension_numbers<[1], [0], [0], [1], [0, 0, 1, 1], [], []>} : vector<16x64xbf16>, vector<64x128xbf16>, vector<16x128xf32> -> vector<16x128xf32>
    %c1 = arith.constant 1 : index
    %c0_12 = arith.constant 0 : index
    %c0_13 = arith.constant 0 : index
    %21 = vector.load %arg4[%c1, %c0_12, %c0_13] : memref<3x64x128xbf16, #tpu.memory_space<vmem>>, vector<1x64x128xbf16>
    %22 = vector.shape_cast %21 : vector<1x64x128xbf16> to vector<64x128xbf16>
    %cst_14 = arith.constant dense<0.000000e+00> : vector<16x128xf32>
    %23 = tpu.matmul %13, %22, %cst_14 {dimension_numbers = #tpu.dot_dimension_numbers<[1], [0], [0], [1], [0, 0, 1, 1], [], []>} : vector<16x64xbf16>, vector<64x128xbf16>, vector<16x128xf32> -> vector<16x128xf32>
    %24 = arith.addf %20, %23 : vector<16x128xf32>
    %cst_15 = arith.constant 0.000000e+00 : bf16
    %25 = vector.broadcast %cst_15 : bf16 to vector<2x64xbf16>
    %26 = vector.extract_strided_slice %13 {offsets = [2, 0], sizes = [14, 64], strides = [1, 1]} : vector<16x64xbf16> to vector<14x64xbf16>
    %27 = tpu.concatenate %26, %25 in 0 : vector<14x64xbf16>, vector<2x64xbf16> -> vector<16x64xbf16>
    %c2 = arith.constant 2 : index
    %c0_16 = arith.constant 0 : index
    %c0_17 = arith.constant 0 : index
    %28 = vector.load %arg4[%c2, %c0_16, %c0_17] : memref<3x64x128xbf16, #tpu.memory_space<vmem>>, vector<1x64x128xbf16>
    %29 = vector.shape_cast %28 : vector<1x64x128xbf16> to vector<64x128xbf16>
    %cst_18 = arith.constant dense<0.000000e+00> : vector<16x128xf32>
    %30 = tpu.matmul %27, %29, %cst_18 {dimension_numbers = #tpu.dot_dimension_numbers<[1], [0], [0], [1], [0, 0, 1, 1], [], []>} : vector<16x64xbf16>, vector<64x128xbf16>, vector<16x128xf32> -> vector<16x128xf32>
    %31 = arith.addf %24, %30 : vector<16x128xf32>
    %32 = vector.broadcast %14 : vector<1x128xf32> to vector<16x128xf32>
    %33 = arith.addf %31, %32 : vector<16x128xf32>
    %cst_19 = arith.constant 0.000000e+00 : f32
    %34 = vector.broadcast %cst_19 : f32 to vector<16x128xf32>
    %35 = arith.maximumf %33, %34 : vector<16x128xf32>
    %36 = arith.truncf %35 : vector<16x128xf32> to vector<16x128xbf16>
    %c0_i32_20 = arith.constant 0 : i32
    %37 = tpu.memref_slice %arg13[%c0_i32_20] : memref<2x!tpu.dma_semaphore, #tpu.memory_space<semaphore_mem>> -> memref<1x!tpu.dma_semaphore, #tpu.memory_space<semaphore_mem>>
    %38 = tpu.memref_squeeze %37 : memref<1x!tpu.dma_semaphore, #tpu.memory_space<semaphore_mem>> -> memref<!tpu.dma_semaphore, #tpu.memory_space<semaphore_mem>>
    tpu.wait_dma2 semaphore(%38 : memref<!tpu.dma_semaphore, #tpu.memory_space<semaphore_mem>>) src(%arg8 : memref<3x128x256xbf16, #tpu.memory_space<any>>) dst(%arg11 : memref<3x128x256xbf16, #tpu.memory_space<vmem>>)
    %c0_21 = arith.constant 0 : index
    %c0_22 = arith.constant 0 : index
    %39 = vector.load %arg6[%c0_21, %c0_22] : memref<1x256xf32, #tpu.memory_space<vmem>>, vector<1x256xf32>
    %cst_23 = arith.constant 0.000000e+00 : bf16
    %40 = vector.broadcast %cst_23 : bf16 to vector<2x128xbf16>
    %41 = vector.extract_strided_slice %36 {offsets = [0, 0], sizes = [14, 128], strides = [1, 1]} : vector<16x128xbf16> to vector<14x128xbf16>
    %42 = tpu.concatenate %40, %41 in 0 : vector<2x128xbf16>, vector<14x128xbf16> -> vector<16x128xbf16>
    %c0_24 = arith.constant 0 : index
    %c0_25 = arith.constant 0 : index
    %c0_26 = arith.constant 0 : index
    %43 = vector.load %arg11[%c0_24, %c0_25, %c0_26] : memref<3x128x256xbf16, #tpu.memory_space<vmem>>, vector<1x128x256xbf16>
    %44 = vector.shape_cast %43 : vector<1x128x256xbf16> to vector<128x256xbf16>
    %cst_27 = arith.constant dense<0.000000e+00> : vector<16x256xf32>
    %45 = tpu.matmul %42, %44, %cst_27 {dimension_numbers = #tpu.dot_dimension_numbers<[1], [0], [0], [1], [0, 0, 1, 1], [], []>} : vector<16x128xbf16>, vector<128x256xbf16>, vector<16x256xf32> -> vector<16x256xf32>
    %c1_28 = arith.constant 1 : index
    %c0_29 = arith.constant 0 : index
    %c0_30 = arith.constant 0 : index
    %46 = vector.load %arg11[%c1_28, %c0_29, %c0_30] : memref<3x128x256xbf16, #tpu.memory_space<vmem>>, vector<1x128x256xbf16>
    %47 = vector.shape_cast %46 : vector<1x128x256xbf16> to vector<128x256xbf16>
    %cst_31 = arith.constant dense<0.000000e+00> : vector<16x256xf32>
    %48 = tpu.matmul %36, %47, %cst_31 {dimension_numbers = #tpu.dot_dimension_numbers<[1], [0], [0], [1], [0, 0, 1, 1], [], []>} : vector<16x128xbf16>, vector<128x256xbf16>, vector<16x256xf32> -> vector<16x256xf32>
    %49 = arith.addf %45, %48 : vector<16x256xf32>
    %cst_32 = arith.constant 0.000000e+00 : bf16
    %50 = vector.broadcast %cst_32 : bf16 to vector<2x128xbf16>
    %51 = vector.extract_strided_slice %36 {offsets = [2, 0], sizes = [14, 128], strides = [1, 1]} : vector<16x128xbf16> to vector<14x128xbf16>
    %52 = tpu.concatenate %51, %50 in 0 : vector<14x128xbf16>, vector<2x128xbf16> -> vector<16x128xbf16>
    %c2_33 = arith.constant 2 : index
    %c0_34 = arith.constant 0 : index
    %c0_35 = arith.constant 0 : index
    %53 = vector.load %arg11[%c2_33, %c0_34, %c0_35] : memref<3x128x256xbf16, #tpu.memory_space<vmem>>, vector<1x128x256xbf16>
    %54 = vector.shape_cast %53 : vector<1x128x256xbf16> to vector<128x256xbf16>
    %cst_36 = arith.constant dense<0.000000e+00> : vector<16x256xf32>
    %55 = tpu.matmul %52, %54, %cst_36 {dimension_numbers = #tpu.dot_dimension_numbers<[1], [0], [0], [1], [0, 0, 1, 1], [], []>} : vector<16x128xbf16>, vector<128x256xbf16>, vector<16x256xf32> -> vector<16x256xf32>
    %56 = arith.addf %49, %55 : vector<16x256xf32>
    %57 = vector.broadcast %39 : vector<1x256xf32> to vector<16x256xf32>
    %58 = arith.addf %56, %57 : vector<16x256xf32>
    %cst_37 = arith.constant 0.000000e+00 : f32
    %59 = vector.broadcast %cst_37 : f32 to vector<16x256xf32>
    %60 = arith.maximumf %58, %59 : vector<16x256xf32>
    %61 = arith.truncf %60 : vector<16x256xf32> to vector<16x256xbf16>
    %c1_i32_38 = arith.constant 1 : i32
    %62 = tpu.memref_slice %arg13[%c1_i32_38] : memref<2x!tpu.dma_semaphore, #tpu.memory_space<semaphore_mem>> -> memref<1x!tpu.dma_semaphore, #tpu.memory_space<semaphore_mem>>
    %63 = tpu.memref_squeeze %62 : memref<1x!tpu.dma_semaphore, #tpu.memory_space<semaphore_mem>> -> memref<!tpu.dma_semaphore, #tpu.memory_space<semaphore_mem>>
    tpu.wait_dma2 semaphore(%63 : memref<!tpu.dma_semaphore, #tpu.memory_space<semaphore_mem>>) src(%arg9 : memref<2048x64xbf16, #tpu.memory_space<any>>) dst(%arg12 : memref<2048x64xbf16, #tpu.memory_space<vmem>>)
    %64 = vector.extract_strided_slice %61 {offsets = [0, 0], sizes = [2, 256], strides = [1, 1]} : vector<16x256xbf16> to vector<2x256xbf16>
    %65 = vector.extract_strided_slice %61 {offsets = [2, 0], sizes = [2, 256], strides = [1, 1]} : vector<16x256xbf16> to vector<2x256xbf16>
    %66 = vector.extract_strided_slice %61 {offsets = [4, 0], sizes = [2, 256], strides = [1, 1]} : vector<16x256xbf16> to vector<2x256xbf16>
    %67 = vector.extract_strided_slice %61 {offsets = [6, 0], sizes = [2, 256], strides = [1, 1]} : vector<16x256xbf16> to vector<2x256xbf16>
    %68 = vector.extract_strided_slice %61 {offsets = [8, 0], sizes = [2, 256], strides = [1, 1]} : vector<16x256xbf16> to vector<2x256xbf16>
    %69 = vector.extract_strided_slice %61 {offsets = [10, 0], sizes = [2, 256], strides = [1, 1]} : vector<16x256xbf16> to vector<2x256xbf16>
    %70 = vector.extract_strided_slice %61 {offsets = [12, 0], sizes = [2, 256], strides = [1, 1]} : vector<16x256xbf16> to vector<2x256xbf16>
    %71 = vector.extract_strided_slice %61 {offsets = [14, 0], sizes = [2, 256], strides = [1, 1]} : vector<16x256xbf16> to vector<2x256xbf16>
    %72 = tpu.concatenate %64, %65, %66, %67, %68, %69, %70, %71 in 1 : vector<2x256xbf16>, vector<2x256xbf16>, vector<2x256xbf16>, vector<2x256xbf16>, vector<2x256xbf16>, vector<2x256xbf16>, vector<2x256xbf16>, vector<2x256xbf16> -> vector<2x2048xbf16>
    %c0_39 = arith.constant 0 : index
    %c0_40 = arith.constant 0 : index
    %73 = vector.load %arg12[%c0_39, %c0_40] : memref<2048x64xbf16, #tpu.memory_space<vmem>>, vector<2048x64xbf16>
    %cst_41 = arith.constant dense<0.000000e+00> : vector<2x64xf32>
    %74 = tpu.matmul %72, %73, %cst_41 {dimension_numbers = #tpu.dot_dimension_numbers<[1], [0], [0], [1], [0, 0, 1, 1], [], []>} : vector<2x2048xbf16>, vector<2048x64xbf16>, vector<2x64xf32> -> vector<2x64xf32>
    %c0_42 = arith.constant 0 : index
    %c0_43 = arith.constant 0 : index
    %75 = vector.load %arg7[%c0_42, %c0_43] : memref<1x64xf32, #tpu.memory_space<vmem>>, vector<1x64xf32>
    %76 = vector.broadcast %75 : vector<1x64xf32> to vector<2x64xf32>
    %77 = arith.addf %74, %76 : vector<2x64xf32>
    %cst_44 = arith.constant 0.000000e+00 : f32
    %78 = vector.broadcast %cst_44 : f32 to vector<2x64xf32>
    %79 = arith.maximumf %77, %78 : vector<2x64xf32>
    %c0_45 = arith.constant 0 : index
    %c0_46 = arith.constant 0 : index
    %80 = vector.load %arg10[%c0_45, %c0_46] : memref<2x64xf32, #tpu.memory_space<vmem>>, vector<2x64xf32>
    tpu.vector_store %arg10[%c0_45, %c0_46], %79 {strides = array<i32>} : memref<2x64xf32, #tpu.memory_space<vmem>>, vector<2x64xf32>,
    return
  }
  func.func @transform_0(%arg0: i32) -> (i32, i32) {
    %c0_i32 = arith.constant 0 : i32
    %c0_i32_0 = arith.constant 0 : i32
    %c0_i32_1 = arith.constant 0 : i32
    return %c0_i32, %c0_i32_0 : i32, i32
  }
  func.func @transform_1(%arg0: i32) -> (i32, i32) {
    %c0_i32 = arith.constant 0 : i32
    %c0_i32_0 = arith.constant 0 : i32
    %c0_i32_1 = arith.constant 0 : i32
    return %c0_i32, %c0_i32_0 : i32, i32
  }
  func.func @transform_2(%arg0: i32) -> (i32, i32) {
    %c0_i32 = arith.constant 0 : i32
    %c0_i32_0 = arith.constant 0 : i32
    %c0_i32_1 = arith.constant 0 : i32
    return %c0_i32, %c0_i32_0 : i32, i32
  }
  func.func @transform_3(%arg0: i32) -> (i32, i32, i32) {
    %c0_i32 = arith.constant 0 : i32
    %c0_i32_0 = arith.constant 0 : i32
    %c0_i32_1 = arith.constant 0 : i32
    %c0_i32_2 = arith.constant 0 : i32
    return %c0_i32, %c0_i32_0, %c0_i32_1 : i32, i32, i32
  }
  func.func @transform_4(%arg0: i32) -> (i32, i32) {
    %c0_i32 = arith.constant 0 : i32
    %c0_i32_0 = arith.constant 0 : i32
    %c0_i32_1 = arith.constant 0 : i32
    return %c0_i32, %c0_i32_0 : i32, i32
  }
  func.func @transform_5(%arg0: i32) -> (i32, i32) {
    %c0_i32 = arith.constant 0 : i32
    %c0_i32_0 = arith.constant 0 : i32
    %c0_i32_1 = arith.constant 0 : i32
    return %c0_i32, %c0_i32_0 : i32, i32
  }
  func.func @transform_6(%arg0: i32) -> (i32, i32) {
    %c0_i32 = arith.constant 0 : i32
    %c0_i32_0 = arith.constant 0 : i32
    %c0_i32_1 = arith.constant 0 : i32
    return %c0_i32, %c0_i32_0 : i32, i32
  }
  func.func @transform_9(%arg0: i32) -> (i32, i32) {
    %c0_i32 = arith.constant 0 : i32
    %c0_i32_0 = arith.constant 0 : i32
    %c0_i32_1 = arith.constant 0 : i32
    return %c0_i32, %c0_i32_0 : i32, i32
  }
}

</mosaic_0001>

<llo_original>
// kernel: _lambda_.1
$region0: #{_lambda_.1}
  #allocation0 [shape = 'u32[]', space=smem, size = 0x4, offset = 0x4, fixed_abs, tag = 'smem constant byte address 0x4 - core index']
  #allocation1 [shape = 'u32[144,128]{1,0:T(1,128)}', space=vmem, size = 0x12000, scoped, tag = 'internal scratch']
  #allocation2 [shape = 'bf16[3,128,256]{2,1,0:T(16,128)(2,1)}', space=vmem, size = 0x30000, scoped, tag = 'scratch operand']
  #allocation3 [shape = 'bf16[2048,64]{1,0:T(16,128)(2,1)}', space=vmem, size = 0x80000, scoped, tag = 'scratch operand']
  #allocation4 [shape = 's32[2]{0}', space=sflag, size = 0x8, scoped, tag = 'scratch operand']
  #allocation7 [shape = 's32[]', space=sflag, size = 0x4, offset = 0, fixed_abs, tag = 'sflag constant byte address 0x0 - dummy sync flag']
  #allocation8 [shape = 's32[]', space=sflag, size = 0x4, offset = 0, fixed_abs, tag = 'sflag constant byte address 0x0 - dummy sync flag']
  %s0 = inlined_call_operand.vmem [shape: s32[16,128], index: 0, kind: input, shape index: {}]
  %s1 = inlined_call_operand.vmem [shape: s32[1,128], index: 1, kind: input, shape index: {}]
  %s2 = inlined_call_operand.vmem [shape: bf16[128,64], index: 2, kind: input, shape index: {}]
  %s3 = inlined_call_operand.vmem [shape: bf16[3,64,128], index: 3, kind: input, shape index: {}]
  %s4 = inlined_call_operand.vmem [shape: f32[1,128], index: 4, kind: input, shape index: {}]
  %s5 = inlined_call_operand.vmem [shape: f32[1,256], index: 5, kind: input, shape index: {}]
  %s6 = inlined_call_operand.vmem [shape: f32[1,64], index: 6, kind: input, shape index: {}]
  %s7 = inlined_call_operand.vmem [shape: bf16[3,128,256], index: 7, kind: input, shape index: {}]
  %s8 = inlined_call_operand.vmem [shape: bf16[2048,64], index: 8, kind: input, shape index: {}]
  %s9 = inlined_call_operand.hbm [shape: f32[2,64], index: 9, kind: output, shape index: {}]
  %s10 = sld [smem:[#allocation0]]
  $region109: #{_lambda_.1} parent=0
    _
  %s12 = ssub.s32 1, %s10
  %s13 = scalar_select 0, %s12, %s10
  $region1: #{_lambda_.1} parent=0
    #allocation5 [shape = 'u8[1024]{0}', space=vmem, size = 0x400, scoped, tag = 'output window, operand 0, single buffered']
    #allocation6 [shape = 's32[1]{0}', space=sflag, size = 0x4, scoped, tag = 'scoped memory for _lambda_.1']
    %14 = vsyncpa [#allocation6], 0
    // Predicated region
    $region2: #{_lambda_.1} parent=1 // pred_check
      _
    $region3: #{_lambda_.1} parent=1 // pred_check_branch
      %16 = sbr.rel (0) target = $region5
    $region4: #{_lambda_.1} parent=1 // pred_region
      _
    $region5: #{_lambda_.1} parent=1 // pred_fallthru
      _
    // Predicated region
    $region6: #{_lambda_.1} parent=1 // pred_check
      _
    $region7: #{_lambda_.1} parent=1 // pred_check_branch
      %18 = sbr.rel (0) target = $region9
    $region8: #{_lambda_.1} parent=1 // pred_region
      _
    $region9: #{_lambda_.1} parent=1 // pred_fallthru
      _
    // Predicated region
    $region10: #{_lambda_.1} parent=1 // pred_check
      _
    $region11: #{_lambda_.1} parent=1 // pred_check_branch
      %20 = sbr.rel (0) target = $region13
    $region12: #{_lambda_.1} parent=1 // pred_region
      _
    $region13: #{_lambda_.1} parent=1 // pred_fallthru
      _
    // Predicated region
    $region14: #{_lambda_.1} parent=1 // pred_check
      _
    $region15: #{_lambda_.1} parent=1 // pred_check_branch
      %22 = sbr.rel (0) target = $region17
    $region16: #{_lambda_.1} parent=1 // pred_region
      _
    $region17: #{_lambda_.1} parent=1 // pred_fallthru
      _
    // Predicated region
    $region18: #{_lambda_.1} parent=1 // pred_check
      _
    $region19: #{_lambda_.1} parent=1 // pred_check_branch
      %24 = sbr.rel (0) target = $region21
    $region20: #{_lambda_.1} parent=1 // pred_region
      _
    $region21: #{_lambda_.1} parent=1 // pred_fallthru
      _
    // Predicated region
    $region22: #{_lambda_.1} parent=1 // pred_check
      _
    $region23: #{_lambda_.1} parent=1 // pred_check_branch
      %26 = sbr.rel (0) target = $region25
    $region24: #{_lambda_.1} parent=1 // pred_region
      _
    $region25: #{_lambda_.1} parent=1 // pred_fallthru
      _
    // Predicated region
    $region26: #{_lambda_.1} parent=1 // pred_check
      _
    $region27: #{_lambda_.1} parent=1 // pred_check_branch
      %28 = sbr.rel (0) target = $region29
    $region28: #{_lambda_.1} parent=1 // pred_region
      _
    $region29: #{_lambda_.1} parent=1 // pred_fallthru
      _
    %p31 = scmp.lt.u32.totalorder 4, 8
    %p32 = pneg %p31
    // Predicated region
    $region30: #{_lambda_.1} parent=1 // pred_check
      _
    $region31: #{_lambda_.1} parent=1 // pred_check_branch
      %34 = sbr.rel (%p31) target = $region33
    $region32: #{_lambda_.1} parent=1 // pred_region
      %s239 = sand.u32 4, 7
      %p240 = scmp.eq.s32.totalorder %s239, 0
      %p241 = pneg %p240
      // Predicated region
      $region45: #{_lambda_.1} parent=32 // pred_check
        _
      $region46: #{_lambda_.1} parent=32 // pred_check_branch
        %243 = sbr.rel (%p240) target = $region48
      $region47: #{_lambda_.1} parent=32 // pred_region
        %s244 = sand.u32 4, 7
        %s245 = ssub.s32 4, %s244
        %s246 = scalar_lea.vmem %s7, %s245
        %s247 = ssub.s32 4, %s244
        %s248 = scalar_lea.vmem [#allocation2], %s247
        loop: start=0, step=1, limit=1
        $region49: #{_lambda_.1} parent=47 // loop_pre_header
          _
        $region50: #{_lambda_.1} parent=47 // loop_header
          %s250 = sphi 0, %s254
          %p251 = scmp.ge.s32.totalorder %s250, 1
          %s255 = sphi %s7, %s7
          %s256 = sphi [#allocation2], [#allocation2]
        $region51: #{_lambda_.1} parent=47 // loop_header_branch
          %253 = sbr.rel (%p251) target = $region55
        $region52: #{_lambda_.1} parent=47 // loop_body
          _
        $region53: #{_lambda_.1} parent=47 // loop_footer
          %s254 = sadd.s32 1, %s250
        $region54: #{_lambda_.1} parent=47 // loop_footer_branch
          %249 = sbr.rel target = $region50
        $region55: #{_lambda_.1} parent=47 // loop_exit
          _
        %s257 = sshllo.u32 0, %s244
        loop: start=0, step=1, limit=1
        $region56: #{_lambda_.1} parent=47 // loop_pre_header
          _
        $region57: #{_lambda_.1} parent=47 // loop_header
          %s259 = sphi 0, %s263
          %p260 = scmp.ge.s32.totalorder %s259, 1
          %s264 = sphi %s246, %s246
          %s265 = sphi %s248, %s248
        $region58: #{_lambda_.1} parent=47 // loop_header_branch
          %262 = sbr.rel (%p260) target = $region62
        $region59: #{_lambda_.1} parent=47 // loop_body
          %v266 = vld [vmem:[%s264] sm:%s257]
          %267 = vst [vmem:[%s265] sm:%s257] %v266
          %v268 = vld [vmem:[%s264 + $0x8] sm:%s257]
          %269 = vst [vmem:[%s265 + $0x4] sm:%s257] %v268
          %v270 = vld [vmem:[%s264 + $0x4] sm:%s257]
          %271 = vst [vmem:[%s265 + $0x8] sm:%s257] %v270
          %v272 = vld [vmem:[%s264 + $0xc] sm:%s257]
          %273 = vst [vmem:[%s265 + $0xc] sm:%s257] %v272
          %v274 = vld [vmem:[%s264 + $0x10] sm:%s257]
          %275 = vst [vmem:[%s265 + $0x10] sm:%s257] %v274
          %v276 = vld [vmem:[%s264 + $0x18] sm:%s257]
          %277 = vst [vmem:[%s265 + $0x14] sm:%s257] %v276
          %v278 = vld [vmem:[%s264 + $0x14] sm:%s257]
          %279 = vst [vmem:[%s265 + $0x18] sm:%s257] %v278
          %v280 = vld [vmem:[%s264 + $0x1c] sm:%s257]
          %281 = vst [vmem:[%s265 + $0x1c] sm:%s257] %v280
          %v282 = vld [vmem:[%s264 + $0x20] sm:%s257]
          %283 = vst [vmem:[%s265 + $0x20] sm:%s257] %v282
          %v284 = vld [vmem:[%s264 + $0x28] sm:%s257]
          %285 = vst [vmem:[%s265 + $0x24] sm:%s257] %v284
          %v286 = vld [vmem:[%s264 + $0x24] sm:%s257]
          %287 = vst [vmem:[%s265 + $0x28] sm:%s257] %v286
          %v288 = vld [vmem:[%s264 + $0x2c] sm:%s257]
          %289 = vst [vmem:[%s265 + $0x2c] sm:%s257] %v288
          %v290 = vld [vmem:[%s264 + $0x30] sm:%s257]
          %291 = vst [vmem:[%s265 + $0x30] sm:%s257] %v290
          %v292 = vld [vmem:[%s264 + $0x38] sm:%s257]
          %293 = vst [vmem:[%s265 + $0x34] sm:%s257] %v292
          %v294 = vld [vmem:[%s264 + $0x34] sm:%s257]
          %295 = vst [vmem:[%s265 + $0x38] sm:%s257] %v294
          %v296 = vld [vmem:[%s264 + $0x3c] sm:%s257]
          %297 = vst [vmem:[%s265 + $0x3c] sm:%s257] %v296
          %v298 = vld [vmem:[%s264 + $0x40] sm:%s257]
          %299 = vst [vmem:[%s265 + $0x40] sm:%s257] %v298
          %v300 = vld [vmem:[%s264 + $0x48] sm:%s257]
          %301 = vst [vmem:[%s265 + $0x44] sm:%s257] %v300
          %v302 = vld [vmem:[%s264 + $0x44] sm:%s257]
          %303 = vst [vmem:[%s265 + $0x48] sm:%s257] %v302
          %v304 = vld [vmem:[%s264 + $0x4c] sm:%s257]
          %305 = vst [vmem:[%s265 + $0x4c] sm:%s257] %v304
          %v306 = vld [vmem:[%s264 + $0x50] sm:%s257]
          %307 = vst [vmem:[%s265 + $0x50] sm:%s257] %v306
          %v308 = vld [vmem:[%s264 + $0x58] sm:%s257]
          %309 = vst [vmem:[%s265 + $0x54] sm:%s257] %v308
          %v310 = vld [vmem:[%s264 + $0x54] sm:%s257]
          %311 = vst [vmem:[%s265 + $0x58] sm:%s257] %v310
          %v312 = vld [vmem:[%s264 + $0x5c] sm:%s257]
          %313 = vst [vmem:[%s265 + $0x5c] sm:%s257] %v312
          %v314 = vld [vmem:[%s264 + $0x60] sm:%s257]
          %315 = vst [vmem:[%s265 + $0x60] sm:%s257] %v314
          %v316 = vld [vmem:[%s264 + $0x68] sm:%s257]
          %317 = vst [vmem:[%s265 + $0x64] sm:%s257] %v316
          %v318 = vld [vmem:[%s264 + $0x64] sm:%s257]
          %319 = vst [vmem:[%s265 + $0x68] sm:%s257] %v318
          %v320 = vld [vmem:[%s264 + $0x6c] sm:%s257]
          %321 = vst [vmem:[%s265 + $0x6c] sm:%s257] %v320
          %v322 = vld [vmem:[%s264 + $0x70] sm:%s257]
          %323 = vst [vmem:[%s265 + $0x70] sm:%s257] %v322
          %v324 = vld [vmem:[%s264 + $0x78] sm:%s257]
          %325 = vst [vmem:[%s265 + $0x74] sm:%s257] %v324
          %v326 = vld [vmem:[%s264 + $0x74] sm:%s257]
          %327 = vst [vmem:[%s265 + $0x78] sm:%s257] %v326
          %v328 = vld [vmem:[%s264 + $0x7c] sm:%s257]
          %329 = vst [vmem:[%s265 + $0x7c] sm:%s257] %v328
          %v330 = vld [vmem:[%s264 + $0x80] sm:%s257]
          %331 = vst [vmem:[%s265 + $0x80] sm:%s257] %v330
          %v332 = vld [vmem:[%s264 + $0x88] sm:%s257]
          %333 = vst [vmem:[%s265 + $0x84] sm:%s257] %v332
          %v334 = vld [vmem:[%s264 + $0x84] sm:%s257]
          %335 = vst [vmem:[%s265 + $0x88] sm:%s257] %v334
          %v336 = vld [vmem:[%s264 + $0x8c] sm:%s257]
          %337 = vst [vmem:[%s265 + $0x8c] sm:%s257] %v336
          %v338 = vld [vmem:[%s264 + $0x90] sm:%s257]
          %339 = vst [vmem:[%s265 + $0x90] sm:%s257] %v338
          %v340 = vld [vmem:[%s264 + $0x98] sm:%s257]
          %341 = vst [vmem:[%s265 + $0x94] sm:%s257] %v340
          %v342 = vld [vmem:[%s264 + $0x94] sm:%s257]
          %343 = vst [vmem:[%s265 + $0x98] sm:%s257] %v342
          %v344 = vld [vmem:[%s264 + $0x9c] sm:%s257]
          %345 = vst [vmem:[%s265 + $0x9c] sm:%s257] %v344
          %v346 = vld [vmem:[%s264 + $0xa0] sm:%s257]
          %347 = vst [vmem:[%s265 + $0xa0] sm:%s257] %v346
          %v348 = vld [vmem:[%s264 + $0xa8] sm:%s257]
          %349 = vst [vmem:[%s265 + $0xa4] sm:%s257] %v348
          %v350 = vld [vmem:[%s264 + $0xa4] sm:%s257]
          %351 = vst [vmem:[%s265 + $0xa8] sm:%s257] %v350
          %v352 = vld [vmem:[%s264 + $0xac] sm:%s257]
          %353 = vst [vmem:[%s265 + $0xac] sm:%s257] %v352
          %v354 = vld [vmem:[%s264 + $0xb0] sm:%s257]
          %355 = vst [vmem:[%s265 + $0xb0] sm:%s257] %v354
          %v356 = vld [vmem:[%s264 + $0xb8] sm:%s257]
          %357 = vst [vmem:[%s265 + $0xb4] sm:%s257] %v356
          %v358 = vld [vmem:[%s264 + $0xb4] sm:%s257]
          %359 = vst [vmem:[%s265 + $0xb8] sm:%s257] %v358
          %v360 = vld [vmem:[%s264 + $0xbc] sm:%s257]
          %361 = vst [vmem:[%s265 + $0xbc] sm:%s257] %v360
          %v362 = vld [vmem:[%s264 + $0xc0] sm:%s257]
          %363 = vst [vmem:[%s265 + $0xc0] sm:%s257] %v362
          %v364 = vld [vmem:[%s264 + $0xc8] sm:%s257]
          %365 = vst [vmem:[%s265 + $0xc4] sm:%s257] %v364
          %v366 = vld [vmem:[%s264 + $0xc4] sm:%s257]
          %367 = vst [vmem:[%s265 + $0xc8] sm:%s257] %v366
          %v368 = vld [vmem:[%s264 + $0xcc] sm:%s257]
          %369 = vst [vmem:[%s265 + $0xcc] sm:%s257] %v368
          %v370 = vld [vmem:[%s264 + $0xd0] sm:%s257]
          %371 = vst [vmem:[%s265 + $0xd0] sm:%s257] %v370
          %v372 = vld [vmem:[%s264 + $0xd8] sm:%s257]
          %373 = vst [vmem:[%s265 + $0xd4] sm:%s257] %v372
          %v374 = vld [vmem:[%s264 + $0xd4] sm:%s257]
          %375 = vst [vmem:[%s265 + $0xd8] sm:%s257] %v374
          %v376 = vld [vmem:[%s264 + $0xdc] sm:%s257]
          %377 = vst [vmem:[%s265 + $0xdc] sm:%s257] %v376
          %v378 = vld [vmem:[%s264 + $0xe0] sm:%s257]
          %379 = vst [vmem:[%s265 + $0xe0] sm:%s257] %v378
          %v380 = vld [vmem:[%s264 + $0xe8] sm:%s257]
          %381 = vst [vmem:[%s265 + $0xe4] sm:%s257] %v380
          %v382 = vld [vmem:[%s264 + $0xe4] sm:%s257]
          %383 = vst [vmem:[%s265 + $0xe8] sm:%s257] %v382
          %v384 = vld [vmem:[%s264 + $0xec] sm:%s257]
          %385 = vst [vmem:[%s265 + $0xec] sm:%s257] %v384
          %v386 = vld [vmem:[%s264 + $0xf0] sm:%s257]
          %387 = vst [vmem:[%s265 + $0xf0] sm:%s257] %v386
          %v388 = vld [vmem:[%s264 + $0xf8] sm:%s257]
          %389 = vst [vmem:[%s265 + $0xf4] sm:%s257] %v388
          %v390 = vld [vmem:[%s264 + $0xf4] sm:%s257]
          %391 = vst [vmem:[%s265 + $0xf8] sm:%s257] %v390
          %v392 = vld [vmem:[%s264 + $0xfc] sm:%s257]
          %393 = vst [vmem:[%s265 + $0xfc] sm:%s257] %v392
          %v394 = vld [vmem:[%s264 + $0x100] sm:%s257]
          %395 = vst [vmem:[%s265 + $0x100] sm:%s257] %v394
          %v396 = vld [vmem:[%s264 + $0x108] sm:%s257]
          %397 = vst [vmem:[%s265 + $0x104] sm:%s257] %v396
          %v398 = vld [vmem:[%s264 + $0x104] sm:%s257]
          %399 = vst [vmem:[%s265 + $0x108] sm:%s257] %v398
          %v400 = vld [vmem:[%s264 + $0x10c] sm:%s257]
          %401 = vst [vmem:[%s265 + $0x10c] sm:%s257] %v400
          %v402 = vld [vmem:[%s264 + $0x110] sm:%s257]
          %403 = vst [vmem:[%s265 + $0x110] sm:%s257] %v402
          %v404 = vld [vmem:[%s264 + $0x118] sm:%s257]
          %405 = vst [vmem:[%s265 + $0x114] sm:%s257] %v404
          %v406 = vld [vmem:[%s264 + $0x114] sm:%s257]
          %407 = vst [vmem:[%s265 + $0x118] sm:%s257] %v406
          %v408 = vld [vmem:[%s264 + $0x11c] sm:%s257]
          %409 = vst [vmem:[%s265 + $0x11c] sm:%s257] %v408
          %v410 = vld [vmem:[%s264 + $0x120] sm:%s257]
          %411 = vst [vmem:[%s265 + $0x120] sm:%s257] %v410
          %v412 = vld [vmem:[%s264 + $0x128] sm:%s257]
          %413 = vst [vmem:[%s265 + $0x124] sm:%s257] %v412
          %v414 = vld [vmem:[%s264 + $0x124] sm:%s257]
          %415 = vst [vmem:[%s265 + $0x128] sm:%s257] %v414
          %v416 = vld [vmem:[%s264 + $0x12c] sm:%s257]
          %417 = vst [vmem:[%s265 + $0x12c] sm:%s257] %v416
          %v418 = vld [vmem:[%s264 + $0x130] sm:%s257]
          %419 = vst [vmem:[%s265 + $0x130] sm:%s257] %v418
          %v420 = vld [vmem:[%s264 + $0x138] sm:%s257]
          %421 = vst [vmem:[%s265 + $0x134] sm:%s257] %v420
          %v422 = vld [vmem:[%s264 + $0x134] sm:%s257]
          %423 = vst [vmem:[%s265 + $0x138] sm:%s257] %v422
          %v424 = vld [vmem:[%s264 + $0x13c] sm:%s257]
          %425 = vst [vmem:[%s265 + $0x13c] sm:%s257] %v424
          %v426 = vld [vmem:[%s264 + $0x140] sm:%s257]
          %427 = vst [vmem:[%s265 + $0x140] sm:%s257] %v426
          %v428 = vld [vmem:[%s264 + $0x148] sm:%s257]
          %429 = vst [vmem:[%s265 + $0x144] sm:%s257] %v428
          %v430 = vld [vmem:[%s264 + $0x144] sm:%s257]
          %431 = vst [vmem:[%s265 + $0x148] sm:%s257] %v430
          %v432 = vld [vmem:[%s264 + $0x14c] sm:%s257]
          %433 = vst [vmem:[%s265 + $0x14c] sm:%s257] %v432
          %v434 = vld [vmem:[%s264 + $0x150] sm:%s257]
          %435 = vst [vmem:[%s265 + $0x150] sm:%s257] %v434
          %v436 = vld [vmem:[%s264 + $0x158] sm:%s257]
          %437 = vst [vmem:[%s265 + $0x154] sm:%s257] %v436
          %v438 = vld [vmem:[%s264 + $0x154] sm:%s257]
          %439 = vst [vmem:[%s265 + $0x158] sm:%s257] %v438
          %v440 = vld [vmem:[%s264 + $0x15c] sm:%s257]
          %441 = vst [vmem:[%s265 + $0x15c] sm:%s257] %v440
          %v442 = vld [vmem:[%s264 + $0x160] sm:%s257]
          %443 = vst [vmem:[%s265 + $0x160] sm:%s257] %v442
          %v444 = vld [vmem:[%s264 + $0x168] sm:%s257]
          %445 = vst [vmem:[%s265 + $0x164] sm:%s257] %v444
          %v446 = vld [vmem:[%s264 + $0x164] sm:%s257]
          %447 = vst [vmem:[%s265 + $0x168] sm:%s257] %v446
          %v448 = vld [vmem:[%s264 + $0x16c] sm:%s257]
          %449 = vst [vmem:[%s265 + $0x16c] sm:%s257] %v448
          %v450 = vld [vmem:[%s264 + $0x170] sm:%s257]
          %451 = vst [vmem:[%s265 + $0x170] sm:%s257] %v450
          %v452 = vld [vmem:[%s264 + $0x178] sm:%s257]
          %453 = vst [vmem:[%s265 + $0x174] sm:%s257] %v452
          %v454 = vld [vmem:[%s264 + $0x174] sm:%s257]
          %455 = vst [vmem:[%s265 + $0x178] sm:%s257] %v454
          %v456 = vld [vmem:[%s264 + $0x17c] sm:%s257]
          %457 = vst [vmem:[%s265 + $0x17c] sm:%s257] %v456
        $region60: #{_lambda_.1} parent=47 // loop_footer
          %s263 = sadd.s32 1, %s259
        $region61: #{_lambda_.1} parent=47 // loop_footer_branch
          %258 = sbr.rel target = $region57
        $region62: #{_lambda_.1} parent=47 // loop_exit
          _
      $region48: #{_lambda_.1} parent=32 // pred_fallthru
        _
    $region33: #{_lambda_.1} parent=1 // pred_fallthru
      _
    // Predicated region
    $region34: #{_lambda_.1} parent=1 // pred_check
      %p35 = pneg %p31
    $region35: #{_lambda_.1} parent=1 // pred_check_branch
      %37 = sbr.rel (%p35) target = $region37
    $region36: #{_lambda_.1} parent=1 // pred_region
      %s38 = sshllo.u32 0, 4
      loop: start=0, step=1, limit=1
      $region38: #{_lambda_.1} parent=36 // loop_pre_header
        _
      $region39: #{_lambda_.1} parent=36 // loop_header
        %s40 = sphi 0, %s44
        %p41 = scmp.ge.s32.totalorder %s40, 1
        %s45 = sphi %s7, %s7
        %s46 = sphi [#allocation2], [#allocation2]
      $region40: #{_lambda_.1} parent=36 // loop_header_branch
        %43 = sbr.rel (%p41) target = $region44
      $region41: #{_lambda_.1} parent=36 // loop_body
        %v47 = vld [vmem:[%s45] sm:%s38]
        %48 = vst [vmem:[%s46] sm:%s38] %v47
        %v49 = vld [vmem:[%s45 + $0x8] sm:%s38]
        %50 = vst [vmem:[%s46 + $0x4] sm:%s38] %v49
        %v51 = vld [vmem:[%s45 + $0x4] sm:%s38]
        %52 = vst [vmem:[%s46 + $0x8] sm:%s38] %v51
        %v53 = vld [vmem:[%s45 + $0xc] sm:%s38]
        %54 = vst [vmem:[%s46 + $0xc] sm:%s38] %v53
        %v55 = vld [vmem:[%s45 + $0x10] sm:%s38]
        %56 = vst [vmem:[%s46 + $0x10] sm:%s38] %v55
        %v57 = vld [vmem:[%s45 + $0x18] sm:%s38]
        %58 = vst [vmem:[%s46 + $0x14] sm:%s38] %v57
        %v59 = vld [vmem:[%s45 + $0x14] sm:%s38]
        %60 = vst [vmem:[%s46 + $0x18] sm:%s38] %v59
        %v61 = vld [vmem:[%s45 + $0x1c] sm:%s38]
        %62 = vst [vmem:[%s46 + $0x1c] sm:%s38] %v61
        %v63 = vld [vmem:[%s45 + $0x20] sm:%s38]
        %64 = vst [vmem:[%s46 + $0x20] sm:%s38] %v63
        %v65 = vld [vmem:[%s45 + $0x28] sm:%s38]
        %66 = vst [vmem:[%s46 + $0x24] sm:%s38] %v65
        %v67 = vld [vmem:[%s45 + $0x24] sm:%s38]
        %68 = vst [vmem:[%s46 + $0x28] sm:%s38] %v67
        %v69 = vld [vmem:[%s45 + $0x2c] sm:%s38]
        %70 = vst [vmem:[%s46 + $0x2c] sm:%s38] %v69
        %v71 = vld [vmem:[%s45 + $0x30] sm:%s38]
        %72 = vst [vmem:[%s46 + $0x30] sm:%s38] %v71
        %v73 = vld [vmem:[%s45 + $0x38] sm:%s38]
        %74 = vst [vmem:[%s46 + $0x34] sm:%s38] %v73
        %v75 = vld [vmem:[%s45 + $0x34] sm:%s38]
        %76 = vst [vmem:[%s46 + $0x38] sm:%s38] %v75
        %v77 = vld [vmem:[%s45 + $0x3c] sm:%s38]
        %78 = vst [vmem:[%s46 + $0x3c] sm:%s38] %v77
        %v79 = vld [vmem:[%s45 + $0x40] sm:%s38]
        %80 = vst [vmem:[%s46 + $0x40] sm:%s38] %v79
        %v81 = vld [vmem:[%s45 + $0x48] sm:%s38]
        %82 = vst [vmem:[%s46 + $0x44] sm:%s38] %v81
        %v83 = vld [vmem:[%s45 + $0x44] sm:%s38]
        %84 = vst [vmem:[%s46 + $0x48] sm:%s38] %v83
        %v85 = vld [vmem:[%s45 + $0x4c] sm:%s38]
        %86 = vst [vmem:[%s46 + $0x4c] sm:%s38] %v85
        %v87 = vld [vmem:[%s45 + $0x50] sm:%s38]
        %88 = vst [vmem:[%s46 + $0x50] sm:%s38] %v87
        %v89 = vld [vmem:[%s45 + $0x58] sm:%s38]
        %90 = vst [vmem:[%s46 + $0x54] sm:%s38] %v89
        %v91 = vld [vmem:[%s45 + $0x54] sm:%s38]
        %92 = vst [vmem:[%s46 + $0x58] sm:%s38] %v91
        %v93 = vld [vmem:[%s45 + $0x5c] sm:%s38]
        %94 = vst [vmem:[%s46 + $0x5c] sm:%s38] %v93
        %v95 = vld [vmem:[%s45 + $0x60] sm:%s38]
        %96 = vst [vmem:[%s46 + $0x60] sm:%s38] %v95
        %v97 = vld [vmem:[%s45 + $0x68] sm:%s38]
        %98 = vst [vmem:[%s46 + $0x64] sm:%s38] %v97
        %v99 = vld [vmem:[%s45 + $0x64] sm:%s38]
        %100 = vst [vmem:[%s46 + $0x68] sm:%s38] %v99
        %v101 = vld [vmem:[%s45 + $0x6c] sm:%s38]
        %102 = vst [vmem:[%s46 + $0x6c] sm:%s38] %v101
        %v103 = vld [vmem:[%s45 + $0x70] sm:%s38]
        %104 = vst [vmem:[%s46 + $0x70] sm:%s38] %v103
        %v105 = vld [vmem:[%s45 + $0x78] sm:%s38]
        %106 = vst [vmem:[%s46 + $0x74] sm:%s38] %v105
        %v107 = vld [vmem:[%s45 + $0x74] sm:%s38]
        %108 = vst [vmem:[%s46 + $0x78] sm:%s38] %v107
        %v109 = vld [vmem:[%s45 + $0x7c] sm:%s38]
        %110 = vst [vmem:[%s46 + $0x7c] sm:%s38] %v109
        %v111 = vld [vmem:[%s45 + $0x80] sm:%s38]
        %112 = vst [vmem:[%s46 + $0x80] sm:%s38] %v111
        %v113 = vld [vmem:[%s45 + $0x88] sm:%s38]
        %114 = vst [vmem:[%s46 + $0x84] sm:%s38] %v113
        %v115 = vld [vmem:[%s45 + $0x84] sm:%s38]
        %116 = vst [vmem:[%s46 + $0x88] sm:%s38] %v115
        %v117 = vld [vmem:[%s45 + $0x8c] sm:%s38]
        %118 = vst [vmem:[%s46 + $0x8c] sm:%s38] %v117
        %v119 = vld [vmem:[%s45 + $0x90] sm:%s38]
        %120 = vst [vmem:[%s46 + $0x90] sm:%s38] %v119
        %v121 = vld [vmem:[%s45 + $0x98] sm:%s38]
        %122 = vst [vmem:[%s46 + $0x94] sm:%s38] %v121
        %v123 = vld [vmem:[%s45 + $0x94] sm:%s38]
        %124 = vst [vmem:[%s46 + $0x98] sm:%s38] %v123
        %v125 = vld [vmem:[%s45 + $0x9c] sm:%s38]
        %126 = vst [vmem:[%s46 + $0x9c] sm:%s38] %v125
        %v127 = vld [vmem:[%s45 + $0xa0] sm:%s38]
        %128 = vst [vmem:[%s46 + $0xa0] sm:%s38] %v127
        %v129 = vld [vmem:[%s45 + $0xa8] sm:%s38]
        %130 = vst [vmem:[%s46 + $0xa4] sm:%s38] %v129
        %v131 = vld [vmem:[%s45 + $0xa4] sm:%s38]
        %132 = vst [vmem:[%s46 + $0xa8] sm:%s38] %v131
        %v133 = vld [vmem:[%s45 + $0xac] sm:%s38]
        %134 = vst [vmem:[%s46 + $0xac] sm:%s38] %v133
        %v135 = vld [vmem:[%s45 + $0xb0] sm:%s38]
        %136 = vst [vmem:[%s46 + $0xb0] sm:%s38] %v135
        %v137 = vld [vmem:[%s45 + $0xb8] sm:%s38]
        %138 = vst [vmem:[%s46 + $0xb4] sm:%s38] %v137
        %v139 = vld [vmem:[%s45 + $0xb4] sm:%s38]
        %140 = vst [vmem:[%s46 + $0xb8] sm:%s38] %v139
        %v141 = vld [vmem:[%s45 + $0xbc] sm:%s38]
        %142 = vst [vmem:[%s46 + $0xbc] sm:%s38] %v141
        %v143 = vld [vmem:[%s45 + $0xc0] sm:%s38]
        %144 = vst [vmem:[%s46 + $0xc0] sm:%s38] %v143
        %v145 = vld [vmem:[%s45 + $0xc8] sm:%s38]
        %146 = vst [vmem:[%s46 + $0xc4] sm:%s38] %v145
        %v147 = vld [vmem:[%s45 + $0xc4] sm:%s38]
        %148 = vst [vmem:[%s46 + $0xc8] sm:%s38] %v147
        %v149 = vld [vmem:[%s45 + $0xcc] sm:%s38]
        %150 = vst [vmem:[%s46 + $0xcc] sm:%s38] %v149
        %v151 = vld [vmem:[%s45 + $0xd0] sm:%s38]
        %152 = vst [vmem:[%s46 + $0xd0] sm:%s38] %v151
        %v153 = vld [vmem:[%s45 + $0xd8] sm:%s38]
        %154 = vst [vmem:[%s46 + $0xd4] sm:%s38] %v153
        %v155 = vld [vmem:[%s45 + $0xd4] sm:%s38]
        %156 = vst [vmem:[%s46 + $0xd8] sm:%s38] %v155
        %v157 = vld [vmem:[%s45 + $0xdc] sm:%s38]
        %158 = vst [vmem:[%s46 + $0xdc] sm:%s38] %v157
        %v159 = vld [vmem:[%s45 + $0xe0] sm:%s38]
        %160 = vst [vmem:[%s46 + $0xe0] sm:%s38] %v159
        %v161 = vld [vmem:[%s45 + $0xe8] sm:%s38]
        %162 = vst [vmem:[%s46 + $0xe4] sm:%s38] %v161
        %v163 = vld [vmem:[%s45 + $0xe4] sm:%s38]
        %164 = vst [vmem:[%s46 + $0xe8] sm:%s38] %v163
        %v165 = vld [vmem:[%s45 + $0xec] sm:%s38]
        %166 = vst [vmem:[%s46 + $0xec] sm:%s38] %v165
        %v167 = vld [vmem:[%s45 + $0xf0] sm:%s38]
        %168 = vst [vmem:[%s46 + $0xf0] sm:%s38] %v167
        %v169 = vld [vmem:[%s45 + $0xf8] sm:%s38]
        %170 = vst [vmem:[%s46 + $0xf4] sm:%s38] %v169
        %v171 = vld [vmem:[%s45 + $0xf4] sm:%s38]
        %172 = vst [vmem:[%s46 + $0xf8] sm:%s38] %v171
        %v173 = vld [vmem:[%s45 + $0xfc] sm:%s38]
        %174 = vst [vmem:[%s46 + $0xfc] sm:%s38] %v173
        %v175 = vld [vmem:[%s45 + $0x100] sm:%s38]
        %176 = vst [vmem:[%s46 + $0x100] sm:%s38] %v175
        %v177 = vld [vmem:[%s45 + $0x108] sm:%s38]
        %178 = vst [vmem:[%s46 + $0x104] sm:%s38] %v177
        %v179 = vld [vmem:[%s45 + $0x104] sm:%s38]
        %180 = vst [vmem:[%s46 + $0x108] sm:%s38] %v179
        %v181 = vld [vmem:[%s45 + $0x10c] sm:%s38]
        %182 = vst [vmem:[%s46 + $0x10c] sm:%s38] %v181
        %v183 = vld [vmem:[%s45 + $0x110] sm:%s38]
        %184 = vst [vmem:[%s46 + $0x110] sm:%s38] %v183
        %v185 = vld [vmem:[%s45 + $0x118] sm:%s38]
        %186 = vst [vmem:[%s46 + $0x114] sm:%s38] %v185
        %v187 = vld [vmem:[%s45 + $0x114] sm:%s38]
        %188 = vst [vmem:[%s46 + $0x118] sm:%s38] %v187
        %v189 = vld [vmem:[%s45 + $0x11c] sm:%s38]
        %190 = vst [vmem:[%s46 + $0x11c] sm:%s38] %v189
        %v191 = vld [vmem:[%s45 + $0x120] sm:%s38]
        %192 = vst [vmem:[%s46 + $0x120] sm:%s38] %v191
        %v193 = vld [vmem:[%s45 + $0x128] sm:%s38]
        %194 = vst [vmem:[%s46 + $0x124] sm:%s38] %v193
        %v195 = vld [vmem:[%s45 + $0x124] sm:%s38]
        %196 = vst [vmem:[%s46 + $0x128] sm:%s38] %v195
        %v197 = vld [vmem:[%s45 + $0x12c] sm:%s38]
        %198 = vst [vmem:[%s46 + $0x12c] sm:%s38] %v197
        %v199 = vld [vmem:[%s45 + $0x130] sm:%s38]
        %200 = vst [vmem:[%s46 + $0x130] sm:%s38] %v199
        %v201 = vld [vmem:[%s45 + $0x138] sm:%s38]
        %202 = vst [vmem:[%s46 + $0x134] sm:%s38] %v201
        %v203 = vld [vmem:[%s45 + $0x134] sm:%s38]
        %204 = vst [vmem:[%s46 + $0x138] sm:%s38] %v203
        %v205 = vld [vmem:[%s45 + $0x13c] sm:%s38]
        %206 = vst [vmem:[%s46 + $0x13c] sm:%s38] %v205
        %v207 = vld [vmem:[%s45 + $0x140] sm:%s38]
        %208 = vst [vmem:[%s46 + $0x140] sm:%s38] %v207
        %v209 = vld [vmem:[%s45 + $0x148] sm:%s38]
        %210 = vst [vmem:[%s46 + $0x144] sm:%s38] %v209
        %v211 = vld [vmem:[%s45 + $0x144] sm:%s38]
        %212 = vst [vmem:[%s46 + $0x148] sm:%s38] %v211
        %v213 = vld [vmem:[%s45 + $0x14c] sm:%s38]
        %214 = vst [vmem:[%s46 + $0x14c] sm:%s38] %v213
        %v215 = vld [vmem:[%s45 + $0x150] sm:%s38]
        %216 = vst [vmem:[%s46 + $0x150] sm:%s38] %v215
        %v217 = vld [vmem:[%s45 + $0x158] sm:%s38]
        %218 = vst [vmem:[%s46 + $0x154] sm:%s38] %v217
        %v219 = vld [vmem:[%s45 + $0x154] sm:%s38]
        %220 = vst [vmem:[%s46 + $0x158] sm:%s38] %v219
        %v221 = vld [vmem:[%s45 + $0x15c] sm:%s38]
        %222 = vst [vmem:[%s46 + $0x15c] sm:%s38] %v221
        %v223 = vld [vmem:[%s45 + $0x160] sm:%s38]
        %224 = vst [vmem:[%s46 + $0x160] sm:%s38] %v223
        %v225 = vld [vmem:[%s45 + $0x168] sm:%s38]
        %226 = vst [vmem:[%s46 + $0x164] sm:%s38] %v225
        %v227 = vld [vmem:[%s45 + $0x164] sm:%s38]
        %228 = vst [vmem:[%s46 + $0x168] sm:%s38] %v227
        %v229 = vld [vmem:[%s45 + $0x16c] sm:%s38]
        %230 = vst [vmem:[%s46 + $0x16c] sm:%s38] %v229
        %v231 = vld [vmem:[%s45 + $0x170] sm:%s38]
        %232 = vst [vmem:[%s46 + $0x170] sm:%s38] %v231
        %v233 = vld [vmem:[%s45 + $0x178] sm:%s38]
        %234 = vst [vmem:[%s46 + $0x174] sm:%s38] %v233
        %v235 = vld [vmem:[%s45 + $0x174] sm:%s38]
        %236 = vst [vmem:[%s46 + $0x178] sm:%s38] %v235
        %v237 = vld [vmem:[%s45 + $0x17c] sm:%s38]
        %238 = vst [vmem:[%s46 + $0x17c] sm:%s38] %v237
      $region42: #{_lambda_.1} parent=36 // loop_footer
        %s44 = sadd.s32 1, %s40
      $region43: #{_lambda_.1} parent=36 // loop_footer_branch
        %39 = sbr.rel target = $region39
      $region44: #{_lambda_.1} parent=36 // loop_exit
        _
    $region37: #{_lambda_.1} parent=1 // pred_fallthru
      _
    // Predicated region
    $region63: #{_lambda_.1} parent=1 // pred_check
      _
    $region64: #{_lambda_.1} parent=1 // pred_check_branch
      %460 = sbr.rel (0) target = $region66
    $region65: #{_lambda_.1} parent=1 // pred_region
      %461 = vsyncadd [#allocation4], 6144
    $region66: #{_lambda_.1} parent=1 // pred_fallthru
      _
    %s462 = scalar_lea.sflag [#allocation4], 1
    %p464 = scmp.lt.u32.totalorder 1024, 8
    %p465 = pneg %p464
    // Predicated region
    $region67: #{_lambda_.1} parent=1 // pred_check
      _
    $region68: #{_lambda_.1} parent=1 // pred_check_branch
      %467 = sbr.rel (%p464) target = $region70
    $region69: #{_lambda_.1} parent=1 // pred_region
      %s482 = sand.u32 1024, 7
      %p483 = scmp.eq.s32.totalorder %s482, 0
      // Predicated region
      $region82: #{_lambda_.1} parent=69 // pred_check
        %p484 = pneg %p483
      $region83: #{_lambda_.1} parent=69 // pred_check_branch
        %486 = sbr.rel (%p484) target = $region85
      $region84: #{_lambda_.1} parent=69 // pred_region
        loop: start=0, step=1, limit=1
        $region86: #{_lambda_.1} parent=84 // loop_pre_header
          _
        $region87: #{_lambda_.1} parent=84 // loop_header
          %s488 = sphi 0, %s492
          %p489 = scmp.ge.s32.totalorder %s488, 1
          %s493 = sphi %s8, %s8
          %s494 = sphi [#allocation3], [#allocation3]
        $region88: #{_lambda_.1} parent=84 // loop_header_branch
          %491 = sbr.rel (%p489) target = $region92
        $region89: #{_lambda_.1} parent=84 // loop_body
          %v495 = vld [vmem:[%s493] sm:$0xff]
          %496 = vst [vmem:[%s494] sm:$0xff] %v495
          %v497 = vld [vmem:[%s493 + $0x8] sm:$0xff]
          %498 = vst [vmem:[%s494 + $0x8] sm:$0xff] %v497
          %v499 = vld [vmem:[%s493 + $0x10] sm:$0xff]
          %500 = vst [vmem:[%s494 + $0x10] sm:$0xff] %v499
          %v501 = vld [vmem:[%s493 + $0x18] sm:$0xff]
          %502 = vst [vmem:[%s494 + $0x18] sm:$0xff] %v501
          %v503 = vld [vmem:[%s493 + $0x20] sm:$0xff]
          %504 = vst [vmem:[%s494 + $0x20] sm:$0xff] %v503
          %v505 = vld [vmem:[%s493 + $0x28] sm:$0xff]
          %506 = vst [vmem:[%s494 + $0x28] sm:$0xff] %v505
          %v507 = vld [vmem:[%s493 + $0x30] sm:$0xff]
          %508 = vst [vmem:[%s494 + $0x30] sm:$0xff] %v507
          %v509 = vld [vmem:[%s493 + $0x38] sm:$0xff]
          %510 = vst [vmem:[%s494 + $0x38] sm:$0xff] %v509
          %v511 = vld [vmem:[%s493 + $0x40] sm:$0xff]
          %512 = vst [vmem:[%s494 + $0x40] sm:$0xff] %v511
          %v513 = vld [vmem:[%s493 + $0x48] sm:$0xff]
          %514 = vst [vmem:[%s494 + $0x48] sm:$0xff] %v513
          %v515 = vld [vmem:[%s493 + $0x50] sm:$0xff]
          %516 = vst [vmem:[%s494 + $0x50] sm:$0xff] %v515
          %v517 = vld [vmem:[%s493 + $0x58] sm:$0xff]
          %518 = vst [vmem:[%s494 + $0x58] sm:$0xff] %v517
          %v519 = vld [vmem:[%s493 + $0x60] sm:$0xff]
          %520 = vst [vmem:[%s494 + $0x60] sm:$0xff] %v519
          %v521 = vld [vmem:[%s493 + $0x68] sm:$0xff]
          %522 = vst [vmem:[%s494 + $0x68] sm:$0xff] %v521
          %v523 = vld [vmem:[%s493 + $0x70] sm:$0xff]
          %524 = vst [vmem:[%s494 + $0x70] sm:$0xff] %v523
          %v525 = vld [vmem:[%s493 + $0x78] sm:$0xff]
          %526 = vst [vmem:[%s494 + $0x78] sm:$0xff] %v525
          %v527 = vld [vmem:[%s493 + $0x80] sm:$0xff]
          %528 = vst [vmem:[%s494 + $0x80] sm:$0xff] %v527
          %v529 = vld [vmem:[%s493 + $0x88] sm:$0xff]
          %530 = vst [vmem:[%s494 + $0x88] sm:$0xff] %v529
          %v531 = vld [vmem:[%s493 + $0x90] sm:$0xff]
          %532 = vst [vmem:[%s494 + $0x90] sm:$0xff] %v531
          %v533 = vld [vmem:[%s493 + $0x98] sm:$0xff]
          %534 = vst [vmem:[%s494 + $0x98] sm:$0xff] %v533
          %v535 = vld [vmem:[%s493 + $0xa0] sm:$0xff]
          %536 = vst [vmem:[%s494 + $0xa0] sm:$0xff] %v535
          %v537 = vld [vmem:[%s493 + $0xa8] sm:$0xff]
          %538 = vst [vmem:[%s494 + $0xa8] sm:$0xff] %v537
          %v539 = vld [vmem:[%s493 + $0xb0] sm:$0xff]
          %540 = vst [vmem:[%s494 + $0xb0] sm:$0xff] %v539
          %v541 = vld [vmem:[%s493 + $0xb8] sm:$0xff]
          %542 = vst [vmem:[%s494 + $0xb8] sm:$0xff] %v541
          %v543 = vld [vmem:[%s493 + $0xc0] sm:$0xff]
          %544 = vst [vmem:[%s494 + $0xc0] sm:$0xff] %v543
          %v545 = vld [vmem:[%s493 + $0xc8] sm:$0xff]
          %546 = vst [vmem:[%s494 + $0xc8] sm:$0xff] %v545
          %v547 = vld [vmem:[%s493 + $0xd0] sm:$0xff]
          %548 = vst [vmem:[%s494 + $0xd0] sm:$0xff] %v547
          %v549 = vld [vmem:[%s493 + $0xd8] sm:$0xff]
          %550 = vst [vmem:[%s494 + $0xd8] sm:$0xff] %v549
          %v551 = vld [vmem:[%s493 + $0xe0] sm:$0xff]
          %552 = vst [vmem:[%s494 + $0xe0] sm:$0xff] %v551
          %v553 = vld [vmem:[%s493 + $0xe8] sm:$0xff]
          %554 = vst [vmem:[%s494 + $0xe8] sm:$0xff] %v553
          %v555 = vld [vmem:[%s493 + $0xf0] sm:$0xff]
          %556 = vst [vmem:[%s494 + $0xf0] sm:$0xff] %v555
          %v557 = vld [vmem:[%s493 + $0xf8] sm:$0xff]
          %558 = vst [vmem:[%s494 + $0xf8] sm:$0xff] %v557
          %v559 = vld [vmem:[%s493 + $0x100] sm:$0xff]
          %560 = vst [vmem:[%s494 + $0x100] sm:$0xff] %v559
          %v561 = vld [vmem:[%s493 + $0x108] sm:$0xff]
          %562 = vst [vmem:[%s494 + $0x108] sm:$0xff] %v561
          %v563 = vld [vmem:[%s493 + $0x110] sm:$0xff]
          %564 = vst [vmem:[%s494 + $0x110] sm:$0xff] %v563
          %v565 = vld [vmem:[%s493 + $0x118] sm:$0xff]
          %566 = vst [vmem:[%s494 + $0x118] sm:$0xff] %v565
          %v567 = vld [vmem:[%s493 + $0x120] sm:$0xff]
          %568 = vst [vmem:[%s494 + $0x120] sm:$0xff] %v567
          %v569 = vld [vmem:[%s493 + $0x128] sm:$0xff]
          %570 = vst [vmem:[%s494 + $0x128] sm:$0xff] %v569
          %v571 = vld [vmem:[%s493 + $0x130] sm:$0xff]
          %572 = vst [vmem:[%s494 + $0x130] sm:$0xff] %v571
          %v573 = vld [vmem:[%s493 + $0x138] sm:$0xff]
          %574 = vst [vmem:[%s494 + $0x138] sm:$0xff] %v573
          %v575 = vld [vmem:[%s493 + $0x140] sm:$0xff]
          %576 = vst [vmem:[%s494 + $0x140] sm:$0xff] %v575
          %v577 = vld [vmem:[%s493 + $0x148] sm:$0xff]
          %578 = vst [vmem:[%s494 + $0x148] sm:$0xff] %v577
          %v579 = vld [vmem:[%s493 + $0x150] sm:$0xff]
          %580 = vst [vmem:[%s494 + $0x150] sm:$0xff] %v579
          %v581 = vld [vmem:[%s493 + $0x158] sm:$0xff]
          %582 = vst [vmem:[%s494 + $0x158] sm:$0xff] %v581
          %v583 = vld [vmem:[%s493 + $0x160] sm:$0xff]
          %584 = vst [vmem:[%s494 + $0x160] sm:$0xff] %v583
          %v585 = vld [vmem:[%s493 + $0x168] sm:$0xff]
          %586 = vst [vmem:[%s494 + $0x168] sm:$0xff] %v585
          %v587 = vld [vmem:[%s493 + $0x170] sm:$0xff]
          %588 = vst [vmem:[%s494 + $0x170] sm:$0xff] %v587
          %v589 = vld [vmem:[%s493 + $0x178] sm:$0xff]
          %590 = vst [vmem:[%s494 + $0x178] sm:$0xff] %v589
          %v591 = vld [vmem:[%s493 + $0x180] sm:$0xff]
          %592 = vst [vmem:[%s494 + $0x180] sm:$0xff] %v591
          %v593 = vld [vmem:[%s493 + $0x188] sm:$0xff]
          %594 = vst [vmem:[%s494 + $0x188] sm:$0xff] %v593
          %v595 = vld [vmem:[%s493 + $0x190] sm:$0xff]
          %596 = vst [vmem:[%s494 + $0x190] sm:$0xff] %v595
          %v597 = vld [vmem:[%s493 + $0x198] sm:$0xff]
          %598 = vst [vmem:[%s494 + $0x198] sm:$0xff] %v597
          %v599 = vld [vmem:[%s493 + $0x1a0] sm:$0xff]
          %600 = vst [vmem:[%s494 + $0x1a0] sm:$0xff] %v599
          %v601 = vld [vmem:[%s493 + $0x1a8] sm:$0xff]
          %602 = vst [vmem:[%s494 + $0x1a8] sm:$0xff] %v601
          %v603 = vld [vmem:[%s493 + $0x1b0] sm:$0xff]
          %604 = vst [vmem:[%s494 + $0x1b0] sm:$0xff] %v603
          %v605 = vld [vmem:[%s493 + $0x1b8] sm:$0xff]
          %606 = vst [vmem:[%s494 + $0x1b8] sm:$0xff] %v605
          %v607 = vld [vmem:[%s493 + $0x1c0] sm:$0xff]
          %608 = vst [vmem:[%s494 + $0x1c0] sm:$0xff] %v607
          %v609 = vld [vmem:[%s493 + $0x1c8] sm:$0xff]
          %610 = vst [vmem:[%s494 + $0x1c8] sm:$0xff] %v609
          %v611 = vld [vmem:[%s493 + $0x1d0] sm:$0xff]
          %612 = vst [vmem:[%s494 + $0x1d0] sm:$0xff] %v611
          %v613 = vld [vmem:[%s493 + $0x1d8] sm:$0xff]
          %614 = vst [vmem:[%s494 + $0x1d8] sm:$0xff] %v613
          %v615 = vld [vmem:[%s493 + $0x1e0] sm:$0xff]
          %616 = vst [vmem:[%s494 + $0x1e0] sm:$0xff] %v615
          %v617 = vld [vmem:[%s493 + $0x1e8] sm:$0xff]
          %618 = vst [vmem:[%s494 + $0x1e8] sm:$0xff] %v617
          %v619 = vld [vmem:[%s493 + $0x1f0] sm:$0xff]
          %620 = vst [vmem:[%s494 + $0x1f0] sm:$0xff] %v619
          %v621 = vld [vmem:[%s493 + $0x1f8] sm:$0xff]
          %622 = vst [vmem:[%s494 + $0x1f8] sm:$0xff] %v621
          %v623 = vld [vmem:[%s493 + $0x200] sm:$0xff]
          %624 = vst [vmem:[%s494 + $0x200] sm:$0xff] %v623
          %v625 = vld [vmem:[%s493 + $0x208] sm:$0xff]
          %626 = vst [vmem:[%s494 + $0x208] sm:$0xff] %v625
          %v627 = vld [vmem:[%s493 + $0x210] sm:$0xff]
          %628 = vst [vmem:[%s494 + $0x210] sm:$0xff] %v627
          %v629 = vld [vmem:[%s493 + $0x218] sm:$0xff]
          %630 = vst [vmem:[%s494 + $0x218] sm:$0xff] %v629
          %v631 = vld [vmem:[%s493 + $0x220] sm:$0xff]
          %632 = vst [vmem:[%s494 + $0x220] sm:$0xff] %v631
          %v633 = vld [vmem:[%s493 + $0x228] sm:$0xff]
          %634 = vst [vmem:[%s494 + $0x228] sm:$0xff] %v633
          %v635 = vld [vmem:[%s493 + $0x230] sm:$0xff]
          %636 = vst [vmem:[%s494 + $0x230] sm:$0xff] %v635
          %v637 = vld [vmem:[%s493 + $0x238] sm:$0xff]
          %638 = vst [vmem:[%s494 + $0x238] sm:$0xff] %v637
          %v639 = vld [vmem:[%s493 + $0x240] sm:$0xff]
          %640 = vst [vmem:[%s494 + $0x240] sm:$0xff] %v639
          %v641 = vld [vmem:[%s493 + $0x248] sm:$0xff]
          %642 = vst [vmem:[%s494 + $0x248] sm:$0xff] %v641
          %v643 = vld [vmem:[%s493 + $0x250] sm:$0xff]
          %644 = vst [vmem:[%s494 + $0x250] sm:$0xff] %v643
          %v645 = vld [vmem:[%s493 + $0x258] sm:$0xff]
          %646 = vst [vmem:[%s494 + $0x258] sm:$0xff] %v645
          %v647 = vld [vmem:[%s493 + $0x260] sm:$0xff]
          %648 = vst [vmem:[%s494 + $0x260] sm:$0xff] %v647
          %v649 = vld [vmem:[%s493 + $0x268] sm:$0xff]
          %650 = vst [vmem:[%s494 + $0x268] sm:$0xff] %v649
          %v651 = vld [vmem:[%s493 + $0x270] sm:$0xff]
          %652 = vst [vmem:[%s494 + $0x270] sm:$0xff] %v651
          %v653 = vld [vmem:[%s493 + $0x278] sm:$0xff]
          %654 = vst [vmem:[%s494 + $0x278] sm:$0xff] %v653
          %v655 = vld [vmem:[%s493 + $0x280] sm:$0xff]
          %656 = vst [vmem:[%s494 + $0x280] sm:$0xff] %v655
          %v657 = vld [vmem:[%s493 + $0x288] sm:$0xff]
          %658 = vst [vmem:[%s494 + $0x288] sm:$0xff] %v657
          %v659 = vld [vmem:[%s493 + $0x290] sm:$0xff]
          %660 = vst [vmem:[%s494 + $0x290] sm:$0xff] %v659
          %v661 = vld [vmem:[%s493 + $0x298] sm:$0xff]
          %662 = vst [vmem:[%s494 + $0x298] sm:$0xff] %v661
          %v663 = vld [vmem:[%s493 + $0x2a0] sm:$0xff]
          %664 = vst [vmem:[%s494 + $0x2a0] sm:$0xff] %v663
          %v665 = vld [vmem:[%s493 + $0x2a8] sm:$0xff]
          %666 = vst [vmem:[%s494 + $0x2a8] sm:$0xff] %v665
          %v667 = vld [vmem:[%s493 + $0x2b0] sm:$0xff]
          %668 = vst [vmem:[%s494 + $0x2b0] sm:$0xff] %v667
          %v669 = vld [vmem:[%s493 + $0x2b8] sm:$0xff]
          %670 = vst [vmem:[%s494 + $0x2b8] sm:$0xff] %v669
          %v671 = vld [vmem:[%s493 + $0x2c0] sm:$0xff]
          %672 = vst [vmem:[%s494 + $0x2c0] sm:$0xff] %v671
          %v673 = vld [vmem:[%s493 + $0x2c8] sm:$0xff]
          %674 = vst [vmem:[%s494 + $0x2c8] sm:$0xff] %v673
          %v675 = vld [vmem:[%s493 + $0x2d0] sm:$0xff]
          %676 = vst [vmem:[%s494 + $0x2d0] sm:$0xff] %v675
          %v677 = vld [vmem:[%s493 + $0x2d8] sm:$0xff]
          %678 = vst [vmem:[%s494 + $0x2d8] sm:$0xff] %v677
          %v679 = vld [vmem:[%s493 + $0x2e0] sm:$0xff]
          %680 = vst [vmem:[%s494 + $0x2e0] sm:$0xff] %v679
          %v681 = vld [vmem:[%s493 + $0x2e8] sm:$0xff]
          %682 = vst [vmem:[%s494 + $0x2e8] sm:$0xff] %v681
          %v683 = vld [vmem:[%s493 + $0x2f0] sm:$0xff]
          %684 = vst [vmem:[%s494 + $0x2f0] sm:$0xff] %v683
          %v685 = vld [vmem:[%s493 + $0x2f8] sm:$0xff]
          %686 = vst [vmem:[%s494 + $0x2f8] sm:$0xff] %v685
          %v687 = vld [vmem:[%s493 + $0x300] sm:$0xff]
          %688 = vst [vmem:[%s494 + $0x300] sm:$0xff] %v687
          %v689 = vld [vmem:[%s493 + $0x308] sm:$0xff]
          %690 = vst [vmem:[%s494 + $0x308] sm:$0xff] %v689
          %v691 = vld [vmem:[%s493 + $0x310] sm:$0xff]
          %692 = vst [vmem:[%s494 + $0x310] sm:$0xff] %v691
          %v693 = vld [vmem:[%s493 + $0x318] sm:$0xff]
          %694 = vst [vmem:[%s494 + $0x318] sm:$0xff] %v693
          %v695 = vld [vmem:[%s493 + $0x320] sm:$0xff]
          %696 = vst [vmem:[%s494 + $0x320] sm:$0xff] %v695
          %v697 = vld [vmem:[%s493 + $0x328] sm:$0xff]
          %698 = vst [vmem:[%s494 + $0x328] sm:$0xff] %v697
          %v699 = vld [vmem:[%s493 + $0x330] sm:$0xff]
          %700 = vst [vmem:[%s494 + $0x330] sm:$0xff] %v699
          %v701 = vld [vmem:[%s493 + $0x338] sm:$0xff]
          %702 = vst [vmem:[%s494 + $0x338] sm:$0xff] %v701
          %v703 = vld [vmem:[%s493 + $0x340] sm:$0xff]
          %704 = vst [vmem:[%s494 + $0x340] sm:$0xff] %v703
          %v705 = vld [vmem:[%s493 + $0x348] sm:$0xff]
          %706 = vst [vmem:[%s494 + $0x348] sm:$0xff] %v705
          %v707 = vld [vmem:[%s493 + $0x350] sm:$0xff]
          %708 = vst [vmem:[%s494 + $0x350] sm:$0xff] %v707
          %v709 = vld [vmem:[%s493 + $0x358] sm:$0xff]
          %710 = vst [vmem:[%s494 + $0x358] sm:$0xff] %v709
          %v711 = vld [vmem:[%s493 + $0x360] sm:$0xff]
          %712 = vst [vmem:[%s494 + $0x360] sm:$0xff] %v711
          %v713 = vld [vmem:[%s493 + $0x368] sm:$0xff]
          %714 = vst [vmem:[%s494 + $0x368] sm:$0xff] %v713
          %v715 = vld [vmem:[%s493 + $0x370] sm:$0xff]
          %716 = vst [vmem:[%s494 + $0x370] sm:$0xff] %v715
          %v717 = vld [vmem:[%s493 + $0x378] sm:$0xff]
          %718 = vst [vmem:[%s494 + $0x378] sm:$0xff] %v717
          %v719 = vld [vmem:[%s493 + $0x380] sm:$0xff]
          %720 = vst [vmem:[%s494 + $0x380] sm:$0xff] %v719
          %v721 = vld [vmem:[%s493 + $0x388] sm:$0xff]
          %722 = vst [vmem:[%s494 + $0x388] sm:$0xff] %v721
          %v723 = vld [vmem:[%s493 + $0x390] sm:$0xff]
          %724 = vst [vmem:[%s494 + $0x390] sm:$0xff] %v723
          %v725 = vld [vmem:[%s493 + $0x398] sm:$0xff]
          %726 = vst [vmem:[%s494 + $0x398] sm:$0xff] %v725
          %v727 = vld [vmem:[%s493 + $0x3a0] sm:$0xff]
          %728 = vst [vmem:[%s494 + $0x3a0] sm:$0xff] %v727
          %v729 = vld [vmem:[%s493 + $0x3a8] sm:$0xff]
          %730 = vst [vmem:[%s494 + $0x3a8] sm:$0xff] %v729
          %v731 = vld [vmem:[%s493 + $0x3b0] sm:$0xff]
          %732 = vst [vmem:[%s494 + $0x3b0] sm:$0xff] %v731
          %v733 = vld [vmem:[%s493 + $0x3b8] sm:$0xff]
          %734 = vst [vmem:[%s494 + $0x3b8] sm:$0xff] %v733
          %v735 = vld [vmem:[%s493 + $0x3c0] sm:$0xff]
          %736 = vst [vmem:[%s494 + $0x3c0] sm:$0xff] %v735
          %v737 = vld [vmem:[%s493 + $0x3c8] sm:$0xff]
          %738 = vst [vmem:[%s494 + $0x3c8] sm:$0xff] %v737
          %v739 = vld [vmem:[%s493 + $0x3d0] sm:$0xff]
          %740 = vst [vmem:[%s494 + $0x3d0] sm:$0xff] %v739
          %v741 = vld [vmem:[%s493 + $0x3d8] sm:$0xff]
          %742 = vst [vmem:[%s494 + $0x3d8] sm:$0xff] %v741
          %v743 = vld [vmem:[%s493 + $0x3e0] sm:$0xff]
          %744 = vst [vmem:[%s494 + $0x3e0] sm:$0xff] %v743
          %v745 = vld [vmem:[%s493 + $0x3e8] sm:$0xff]
          %746 = vst [vmem:[%s494 + $0x3e8] sm:$0xff] %v745
          %v747 = vld [vmem:[%s493 + $0x3f0] sm:$0xff]
          %748 = vst [vmem:[%s494 + $0x3f0] sm:$0xff] %v747
          %v749 = vld [vmem:[%s493 + $0x3f8] sm:$0xff]
          %750 = vst [vmem:[%s494 + $0x3f8] sm:$0xff] %v749
        $region90: #{_lambda_.1} parent=84 // loop_footer
          %s492 = sadd.s32 1, %s488
        $region91: #{_lambda_.1} parent=84 // loop_footer_branch
          %487 = sbr.rel target = $region87
        $region92: #{_lambda_.1} parent=84 // loop_exit
          _
      $region85: #{_lambda_.1} parent=69 // pred_fallthru
        _
      %p751 = pneg %p483
      // Predicated region
      $region93: #{_lambda_.1} parent=69 // pred_check
        _
      $region94: #{_lambda_.1} parent=69 // pred_check_branch
        %753 = sbr.rel (%p483) target = $region96
      $region95: #{_lambda_.1} parent=69 // pred_region
        %s754 = sand.u32 1024, 7
      $region96: #{_lambda_.1} parent=69 // pred_fallthru
        _
    $region70: #{_lambda_.1} parent=1 // pred_fallthru
      _
    // Predicated region
    $region71: #{_lambda_.1} parent=1 // pred_check
      %p468 = pneg %p464
    $region72: #{_lambda_.1} parent=1 // pred_check_branch
      %470 = sbr.rel (%p468) target = $region74
    $region73: #{_lambda_.1} parent=1 // pred_region
      %s471 = sshllo.u32 0, 1024
      loop: start=0, step=1, limit=1
      $region75: #{_lambda_.1} parent=73 // loop_pre_header
        _
      $region76: #{_lambda_.1} parent=73 // loop_header
        %s473 = sphi 0, %s477
        %p474 = scmp.ge.s32.totalorder %s473, 1
        %s478 = sphi %s8, %s8
        %s479 = sphi [#allocation3], [#allocation3]
      $region77: #{_lambda_.1} parent=73 // loop_header_branch
        %476 = sbr.rel (%p474) target = $region81
      $region78: #{_lambda_.1} parent=73 // loop_body
        %v480 = vld [vmem:[%s478] sm:%s471]
        %481 = vst [vmem:[%s479] sm:%s471] %v480
      $region79: #{_lambda_.1} parent=73 // loop_footer
        %s477 = sadd.s32 1, %s473
      $region80: #{_lambda_.1} parent=73 // loop_footer_branch
        %472 = sbr.rel target = $region76
      $region81: #{_lambda_.1} parent=73 // loop_exit
        _
    $region74: #{_lambda_.1} parent=1 // pred_fallthru
      _
    // Predicated region
    $region97: #{_lambda_.1} parent=1 // pred_check
      _
    $region98: #{_lambda_.1} parent=1 // pred_check_branch
      %757 = sbr.rel (0) target = $region100
    $region99: #{_lambda_.1} parent=1 // pred_region
      %758 = vsyncadd %s462, 16384
    $region100: #{_lambda_.1} parent=1 // pred_fallthru
      _
    %v759 = vld [vmem:[%s0] sm:$0xff]
    %v760 = vld [vmem:[%s0 + $0x8] sm:$0xff]
    %v761 = vld [vmem:[%s1] sm:$0x1]
    %v762 = vlaneseq
    %v763 = vshrl.u32 %v762, 7
    %v764 = vsub.s32 0, %v763
    %v765 = vrot.slane %v761, %v764
    %vm766 = vcmp.eq.s32.totalorder %v759, %v765
    %vm767 = vcmp.eq.s32.totalorder %v760, %v765
    %v768 = vsel %vm766, 1, 0
    %v769 = vsel %vm767, 1, 0
    %v770 = vcvt.s32.f32 %v768
    %v771 = vcvt.s32.f32 %v769
    %v772 = vpack.c.bf16 %v771, %v770
    %v773 = vld [vmem:[%s2] sm:$0xf]
    %v774 = vld [vmem:[%s2 + $0x4] sm:$0xf]
    %v775 = vld [vmem:[%s2 + $0x8] sm:$0xf]
    %v776 = vld [vmem:[%s2 + $0xc] sm:$0xf]
    %v777 = vld [vmem:[%s2 + $0x10] sm:$0xf]
    %v778 = vld [vmem:[%s2 + $0x14] sm:$0xf]
    %v779 = vld [vmem:[%s2 + $0x18] sm:$0xf]
    %v780 = vld [vmem:[%s2 + $0x1c] sm:$0xf]
    %v781 = vld [vmem:[%s2 + $0x20] sm:$0xf]
    %v782 = vld [vmem:[%s2 + $0x24] sm:$0xf]
    %v783 = vld [vmem:[%s2 + $0x28] sm:$0xf]
    %v784 = vld [vmem:[%s2 + $0x2c] sm:$0xf]
    %v785 = vld [vmem:[%s2 + $0x30] sm:$0xf]
    %v786 = vld [vmem:[%s2 + $0x34] sm:$0xf]
    %v787 = vld [vmem:[%s2 + $0x38] sm:$0xf]
    %v788 = vld [vmem:[%s2 + $0x3c] sm:$0xf]
    %v805 = vunpack.c.l.b16 %v773
    %v806 = vunpack.c.l.b16 %v774
    %v807 = vunpack.c.l.b16 %v775
    %v808 = vunpack.c.l.b16 %v776
    %v809 = vunpack.c.l.b16 %v777
    %v810 = vunpack.c.l.b16 %v778
    %v811 = vunpack.c.l.b16 %v779
    %v812 = vunpack.c.l.b16 %v780
    %v813 = vunpack.c.l.b16 %v781
    %v814 = vunpack.c.l.b16 %v782
    %v815 = vunpack.c.l.b16 %v783
    %v816 = vunpack.c.l.b16 %v784
    %v817 = vunpack.c.l.b16 %v785
    %v818 = vunpack.c.l.b16 %v786
    %v819 = vunpack.c.l.b16 %v787
    %v820 = vunpack.c.l.b16 %v788
    %v821 = vpack.c.b16 %v806, %v805
    %v822 = vpack.c.b16 %v808, %v807
    %v823 = vpack.c.b16 %v810, %v809
    %v824 = vpack.c.b16 %v812, %v811
    %v825 = vpack.c.b16 %v814, %v813
    %v826 = vpack.c.b16 %v816, %v815
    %v827 = vpack.c.b16 %v818, %v817
    %v828 = vpack.c.b16 %v820, %v819
    %837 = vmatprep.subr.bf16.mxu0 0
    %838 = vmatpush1.bf16.msra.mxu0 %v821
    %839 = vmatprep.subr.bf16.mxu0 0
    %840 = vmatpush1.bf16.msra.mxu0 %v822
    %841 = vmatprep.subr.bf16.mxu0 0
    %842 = vmatpush1.bf16.msra.mxu0 %v823
    %843 = vmatprep.subr.bf16.mxu0 0
    %844 = vmatpush1.bf16.msra.mxu0 %v824
    %845 = vmatprep.subr.bf16.mxu0 0
    %846 = vmatpush1.bf16.msra.mxu0 %v825
    %847 = vmatprep.subr.bf16.mxu0 0
    %848 = vmatpush1.bf16.msra.mxu0 %v826
    %849 = vmatprep.subr.bf16.mxu0 0
    %850 = vmatpush1.bf16.msra.mxu0 %v827
    %851 = vmatprep.subr.bf16.mxu0 0
    %852 = vmatpush1.bf16.msra.mxu0 %v828
    %853 = vmatprep.subr.bf16.mxu0 0
    %854 = vmatpush1.bf16.msra.mxu0 0
    %855 = vmatprep.subr.bf16.mxu0 0
    %856 = vmatpush1.bf16.msra.mxu0 0
    %857 = vmatprep.subr.bf16.mxu0 0
    %858 = vmatpush1.bf16.msra.mxu0 0
    %859 = vmatprep.subr.bf16.mxu0 0
    %860 = vmatpush1.bf16.msra.mxu0 0
    %861 = vmatprep.subr.bf16.mxu0 0
    %862 = vmatpush1.bf16.msra.mxu0 0
    %863 = vmatprep.subr.bf16.mxu0 0
    %864 = vmatpush1.bf16.msra.mxu0 0
    %865 = vmatprep.subr.bf16.mxu0 0
    %866 = vmatpush1.bf16.msra.mxu0 0
    %867 = vmatprep.subr.bf16.mxu0 0
    %868 = vmatpush1.bf16.msra.mxu0 0
    %869 = vmatprep.mubr.bf16.mxu0 0
    %870 = vmatmul.mubr.bf16.gmra.mrb[0].mxu0 %v772
    %v871 = vpop.f32.mrb[0].mxu0
    %v872 = vadd.f32 0.0, %v871
    %v873 = vpop.f32.mrb[0].mxu0
    %v874 = vpop.f32.mrb[0].mxu0
    %v875 = vadd.f32 0.0, %v874
    %v876 = vpop.f32.mrb[0].mxu0
    %877 = vdwg.mxu0
    %v878 = vpack.c.bf16 %v875, %v872
    %v879 = vld [vmem:[%s4] sm:$0x1]
    %v881 = vrot.slane %v878, 7
    %vm882 = vcmask 1040384
    %v885 = vsel %vm882, 0, %v881
    %v886 = vld [vmem:[%s3] sm:$0xf]
    %v887 = vld [vmem:[%s3 + $0x4] sm:$0xf]
    %v888 = vld [vmem:[%s3 + $0x8] sm:$0xf]
    %v889 = vld [vmem:[%s3 + $0xc] sm:$0xf]
    %v890 = vld [vmem:[%s3 + $0x10] sm:$0xf]
    %v891 = vld [vmem:[%s3 + $0x14] sm:$0xf]
    %v892 = vld [vmem:[%s3 + $0x18] sm:$0xf]
    %v893 = vld [vmem:[%s3 + $0x1c] sm:$0xf]
    %s894 = scalar_lea.vmem %s3, 32
    %v895 = vld [vmem:[%s894] sm:$0xf]
    %v896 = vld [vmem:[%s894 + $0x4] sm:$0xf]
    %v897 = vld [vmem:[%s894 + $0x8] sm:$0xf]
    %v898 = vld [vmem:[%s894 + $0xc] sm:$0xf]
    %v899 = vld [vmem:[%s894 + $0x10] sm:$0xf]
    %v900 = vld [vmem:[%s894 + $0x14] sm:$0xf]
    %v901 = vld [vmem:[%s894 + $0x18] sm:$0xf]
    %v902 = vld [vmem:[%s894 + $0x1c] sm:$0xf]
    %v911 = vunpack.c.l.b16 %v895
    %v912 = vunpack.c.l.b16 %v896
    %v913 = vunpack.c.l.b16 %v897
    %v914 = vunpack.c.l.b16 %v898
    %v915 = vunpack.c.l.b16 %v899
    %v916 = vunpack.c.l.b16 %v900
    %v917 = vunpack.c.l.b16 %v901
    %v918 = vunpack.c.l.b16 %v902
    %v919 = vpack.c.b16 %v912, %v911
    %v920 = vpack.c.b16 %v914, %v913
    %v921 = vpack.c.b16 %v916, %v915
    %v922 = vpack.c.b16 %v918, %v917
    %vm927 = vcmask 523264
    %v929 = vsel %vm927, %v878, 0
    %931 = vmatprep.subr.bf16.mxu0 0
    %932 = vmatpush1.bf16.msra.mxu0 %v919
    %933 = vmatprep.subr.bf16.mxu0 0
    %934 = vmatpush1.bf16.msra.mxu0 %v920
    %935 = vmatprep.subr.bf16.mxu0 0
    %936 = vmatpush1.bf16.msra.mxu0 %v921
    %937 = vmatprep.subr.bf16.mxu0 0
    %938 = vmatpush1.bf16.msra.mxu0 %v922
    %939 = vmatprep.subr.bf16.mxu0 0
    %940 = vmatpush1.bf16.msra.mxu0 0
    %941 = vmatprep.subr.bf16.mxu0 0
    %942 = vmatpush1.bf16.msra.mxu0 0
    %943 = vmatprep.subr.bf16.mxu0 0
    %944 = vmatpush1.bf16.msra.mxu0 0
    %945 = vmatprep.subr.bf16.mxu0 0
    %946 = vmatpush1.bf16.msra.mxu0 0
    %947 = vmatprep.subr.bf16.mxu0 0
    %948 = vmatpush1.bf16.msra.mxu0 0
    %949 = vmatprep.subr.bf16.mxu0 0
    %950 = vmatpush1.bf16.msra.mxu0 0
    %951 = vmatprep.subr.bf16.mxu0 0
    %952 = vmatpush1.bf16.msra.mxu0 0
    %953 = vmatprep.subr.bf16.mxu0 0
    %954 = vmatpush1.bf16.msra.mxu0 0
    %955 = vmatprep.subr.bf16.mxu0 0
    %956 = vmatpush1.bf16.msra.mxu0 0
    %957 = vmatprep.subr.bf16.mxu0 0
    %958 = vmatpush1.bf16.msra.mxu0 0
    %959 = vmatprep.subr.bf16.mxu0 0
    %960 = vmatpush1.bf16.msra.mxu0 0
    %961 = vmatprep.subr.bf16.mxu0 0
    %962 = vmatpush1.bf16.msra.mxu0 0
    %963 = vmatprep.mubr.bf16.mxu0 0
    %964 = vmatmul.mubr.bf16.gmra.mrb[0].mxu0 %v929
    %v965 = vpop.f32.mrb[0].mxu0
    %v966 = vadd.f32 0.0, %v965
    %v967 = vpop.f32.mrb[0].mxu0
    %v968 = vpop.f32.mrb[0].mxu0
    %v969 = vadd.f32 0.0, %v968
    %v970 = vpop.f32.mrb[0].mxu0
    %971 = vdwg.mxu0
    %v980 = vunpack.c.l.b16 %v886
    %v981 = vunpack.c.l.b16 %v887
    %v982 = vunpack.c.l.b16 %v888
    %v983 = vunpack.c.l.b16 %v889
    %v984 = vunpack.c.l.b16 %v890
    %v985 = vunpack.c.l.b16 %v891
    %v986 = vunpack.c.l.b16 %v892
    %v987 = vunpack.c.l.b16 %v893
    %v988 = vpack.c.b16 %v981, %v980
    %v989 = vpack.c.b16 %v983, %v982
    %v990 = vpack.c.b16 %v985, %v984
    %v991 = vpack.c.b16 %v987, %v986
    %v996 = vsel %vm927, %v885, 0
    %998 = vmatprep.subr.bf16.mxu0 0
    %999 = vmatpush1.bf16.msra.mxu0 %v988
    %1000 = vmatprep.subr.bf16.mxu0 0
    %1001 = vmatpush1.bf16.msra.mxu0 %v989
    %1002 = vmatprep.subr.bf16.mxu0 0
    %1003 = vmatpush1.bf16.msra.mxu0 %v990
    %1004 = vmatprep.subr.bf16.mxu0 0
    %1005 = vmatpush1.bf16.msra.mxu0 %v991
    %1006 = vmatprep.subr.bf16.mxu0 0
    %1007 = vmatpush1.bf16.msra.mxu0 0
    %1008 = vmatprep.subr.bf16.mxu0 0
    %1009 = vmatpush1.bf16.msra.mxu0 0
    %1010 = vmatprep.subr.bf16.mxu0 0
    %1011 = vmatpush1.bf16.msra.mxu0 0
    %1012 = vmatprep.subr.bf16.mxu0 0
    %1013 = vmatpush1.bf16.msra.mxu0 0
    %1014 = vmatprep.subr.bf16.mxu0 0
    %1015 = vmatpush1.bf16.msra.mxu0 0
    %1016 = vmatprep.subr.bf16.mxu0 0
    %1017 = vmatpush1.bf16.msra.mxu0 0
    %1018 = vmatprep.subr.bf16.mxu0 0
    %1019 = vmatpush1.bf16.msra.mxu0 0
    %1020 = vmatprep.subr.bf16.mxu0 0
    %1021 = vmatpush1.bf16.msra.mxu0 0
    %1022 = vmatprep.subr.bf16.mxu0 0
    %1023 = vmatpush1.bf16.msra.mxu0 0
    %1024 = vmatprep.subr.bf16.mxu0 0
    %1025 = vmatpush1.bf16.msra.mxu0 0
    %1026 = vmatprep.subr.bf16.mxu0 0
    %1027 = vmatpush1.bf16.msra.mxu0 0
    %1028 = vmatprep.subr.bf16.mxu0 0
    %1029 = vmatpush1.bf16.msra.mxu0 0
    %1030 = vmatprep.mubr.bf16.mxu0 0
    %1031 = vmatmul.mubr.bf16.gmra.mrb[0].mxu0 %v996
    %v1032 = vpop.f32.mrb[0].mxu0
    %v1033 = vadd.f32 %v966, %v1032
    %v1034 = vpop.f32.mrb[0].mxu0
    %v1035 = vpop.f32.mrb[0].mxu0
    %v1036 = vadd.f32 %v969, %v1035
    %v1037 = vpop.f32.mrb[0].mxu0
    %1038 = vdwg.mxu0
    %v1039 = vrot.slane %v878, 1
    %vm1040 = vcmask 1046528
    %v1042 = vsel %vm1040, %v1039, 0
    %s1043 = scalar_lea.vmem %s3, 64
    %v1044 = vld [vmem:[%s1043] sm:$0xf]
    %v1045 = vld [vmem:[%s1043 + $0x4] sm:$0xf]
    %v1046 = vld [vmem:[%s1043 + $0x8] sm:$0xf]
    %v1047 = vld [vmem:[%s1043 + $0xc] sm:$0xf]
    %v1048 = vld [vmem:[%s1043 + $0x10] sm:$0xf]
    %v1049 = vld [vmem:[%s1043 + $0x14] sm:$0xf]
    %v1050 = vld [vmem:[%s1043 + $0x18] sm:$0xf]
    %v1051 = vld [vmem:[%s1043 + $0x1c] sm:$0xf]
    %v1060 = vunpack.c.l.b16 %v1044
    %v1061 = vunpack.c.l.b16 %v1045
    %v1062 = vunpack.c.l.b16 %v1046
    %v1063 = vunpack.c.l.b16 %v1047
    %v1064 = vunpack.c.l.b16 %v1048
    %v1065 = vunpack.c.l.b16 %v1049
    %v1066 = vunpack.c.l.b16 %v1050
    %v1067 = vunpack.c.l.b16 %v1051
    %v1068 = vpack.c.b16 %v1061, %v1060
    %v1069 = vpack.c.b16 %v1063, %v1062
    %v1070 = vpack.c.b16 %v1065, %v1064
    %v1071 = vpack.c.b16 %v1067, %v1066
    %v1076 = vsel %vm927, %v1042, 0
    %1078 = vmatprep.subr.bf16.mxu0 0
    %1079 = vmatpush1.bf16.msra.mxu0 %v1068
    %1080 = vmatprep.subr.bf16.mxu0 0
    %1081 = vmatpush1.bf16.msra.mxu0 %v1069
    %1082 = vmatprep.subr.bf16.mxu0 0
    %1083 = vmatpush1.bf16.msra.mxu0 %v1070
    %1084 = vmatprep.subr.bf16.mxu0 0
    %1085 = vmatpush1.bf16.msra.mxu0 %v1071
    %1086 = vmatprep.subr.bf16.mxu0 0
    %1087 = vmatpush1.bf16.msra.mxu0 0
    %1088 = vmatprep.subr.bf16.mxu0 0
    %1089 = vmatpush1.bf16.msra.mxu0 0
    %1090 = vmatprep.subr.bf16.mxu0 0
    %1091 = vmatpush1.bf16.msra.mxu0 0
    %1092 = vmatprep.subr.bf16.mxu0 0
    %1093 = vmatpush1.bf16.msra.mxu0 0
    %1094 = vmatprep.subr.bf16.mxu0 0
    %1095 = vmatpush1.bf16.msra.mxu0 0
    %1096 = vmatprep.subr.bf16.mxu0 0
    %1097 = vmatpush1.bf16.msra.mxu0 0
    %1098 = vmatprep.subr.bf16.mxu0 0
    %1099 = vmatpush1.bf16.msra.mxu0 0
    %1100 = vmatprep.subr.bf16.mxu0 0
    %1101 = vmatpush1.bf16.msra.mxu0 0
    %1102 = vmatprep.subr.bf16.mxu0 0
    %1103 = vmatpush1.bf16.msra.mxu0 0
    %1104 = vmatprep.subr.bf16.mxu0 0
    %1105 = vmatpush1.bf16.msra.mxu0 0
    %1106 = vmatprep.subr.bf16.mxu0 0
    %1107 = vmatpush1.bf16.msra.mxu0 0
    %1108 = vmatprep.subr.bf16.mxu0 0
    %1109 = vmatpush1.bf16.msra.mxu0 0
    %1110 = vmatprep.mubr.bf16.mxu0 0
    %1111 = vmatmul.mubr.bf16.gmra.mrb[0].mxu0 %v1076
    %v1112 = vpop.f32.mrb[0].mxu0
    %v1113 = vadd.f32 0.0, %v1112
    %v1114 = vpop.f32.mrb[0].mxu0
    %v1115 = vpop.f32.mrb[0].mxu0
    %v1116 = vadd.f32 0.0, %v1115
    %v1117 = vpop.f32.mrb[0].mxu0
    %1118 = vdwg.mxu0
    %v1119 = vadd.f32 %v1033, %v1113
    %v1120 = vadd.f32 %v1036, %v1116
    %v1122 = vlaneseq
    %v1123 = vshrl.u32 %v1122, 7
    %v1124 = vsub.s32 0, %v1123
    %v1125 = vrot.slane %v879, %v1124
    %v1127 = vadd.f32 %v1119, %v1125
    %v1128 = vadd.f32 %v1120, %v1125
    %v1129 = vmax.f32 %v1127, 0.0
    %v1130 = vmax.f32 %v1128, 0.0
    %v1131 = vpack.c.bf16 %v1130, %v1129
    %s1132 = smul.u32 4, 3
    %s1133 = smul.u32 %s1132, 16
    %s1134 = smul.u32 %s1133, 2
    %s1135 = sshll.u32 %s1134, 4
    %1136 = dma.done [#allocation4], %s1135
    %v1137 = vld [vmem:[%s5] sm:$0x3]
    %v1139 = vrot.slane %v1131, 7
    %v1141 = vsel %vm882, 0, %v1139
    %v1143 = vld [vmem:[#allocation2] sm:$0xff]
    %v1144 = vld [vmem:[#allocation2 + $0x8] sm:$0xff]
    %v1145 = vld [vmem:[#allocation2 + $0x10] sm:$0xff]
    %v1146 = vld [vmem:[#allocation2 + $0x18] sm:$0xff]
    %v1147 = vld [vmem:[#allocation2 + $0x20] sm:$0xff]
    %v1148 = vld [vmem:[#allocation2 + $0x28] sm:$0xff]
    %v1149 = vld [vmem:[#allocation2 + $0x30] sm:$0xff]
    %v1150 = vld [vmem:[#allocation2 + $0x38] sm:$0xff]
    %v1151 = vld [vmem:[#allocation2 + $0x40] sm:$0xff]
    %v1152 = vld [vmem:[#allocation2 + $0x48] sm:$0xff]
    %v1153 = vld [vmem:[#allocation2 + $0x50] sm:$0xff]
    %v1154 = vld [vmem:[#allocation2 + $0x58] sm:$0xff]
    %v1155 = vld [vmem:[#allocation2 + $0x60] sm:$0xff]
    %v1156 = vld [vmem:[#allocation2 + $0x68] sm:$0xff]
    %v1157 = vld [vmem:[#allocation2 + $0x70] sm:$0xff]
    %v1158 = vld [vmem:[#allocation2 + $0x78] sm:$0xff]
    %s1159 = scalar_lea.vmem [#allocation2], 128
    %v1160 = vld [vmem:[%s1159] sm:$0xff]
    %v1161 = vld [vmem:[%s1159 + $0x8] sm:$0xff]
    %v1162 = vld [vmem:[%s1159 + $0x10] sm:$0xff]
    %v1163 = vld [vmem:[%s1159 + $0x18] sm:$0xff]
    %v1164 = vld [vmem:[%s1159 + $0x20] sm:$0xff]
    %v1165 = vld [vmem:[%s1159 + $0x28] sm:$0xff]
    %v1166 = vld [vmem:[%s1159 + $0x30] sm:$0xff]
    %v1167 = vld [vmem:[%s1159 + $0x38] sm:$0xff]
    %v1168 = vld [vmem:[%s1159 + $0x40] sm:$0xff]
    %v1169 = vld [vmem:[%s1159 + $0x48] sm:$0xff]
    %v1170 = vld [vmem:[%s1159 + $0x50] sm:$0xff]
    %v1171 = vld [vmem:[%s1159 + $0x58] sm:$0xff]
    %v1172 = vld [vmem:[%s1159 + $0x60] sm:$0xff]
    %v1173 = vld [vmem:[%s1159 + $0x68] sm:$0xff]
    %v1174 = vld [vmem:[%s1159 + $0x70] sm:$0xff]
    %v1175 = vld [vmem:[%s1159 + $0x78] sm:$0xff]
    %1176 = vmatprep.subr.bf16.mxu0 %v1161
    %1177 = vmatpush1.bf16.msra.mxu0 %v1160
    %1178 = vmatprep.subr.bf16.mxu0 %v1163
    %1179 = vmatpush1.bf16.msra.mxu0 %v1162
    %1180 = vmatprep.subr.bf16.mxu0 %v1165
    %1181 = vmatpush1.bf16.msra.mxu0 %v1164
    %1182 = vmatprep.subr.bf16.mxu0 %v1167
    %1183 = vmatpush1.bf16.msra.mxu0 %v1166
    %1184 = vmatprep.subr.bf16.mxu0 %v1169
    %1185 = vmatpush1.bf16.msra.mxu0 %v1168
    %1186 = vmatprep.subr.bf16.mxu0 %v1171
    %1187 = vmatpush1.bf16.msra.mxu0 %v1170
    %1188 = vmatprep.subr.bf16.mxu0 %v1173
    %1189 = vmatpush1.bf16.msra.mxu0 %v1172
    %1190 = vmatprep.subr.bf16.mxu0 %v1175
    %1191 = vmatpush1.bf16.msra.mxu0 %v1174
    %1192 = vmatprep.subr.bf16.mxu0 0
    %1193 = vmatpush1.bf16.msra.mxu0 0
    %1194 = vmatprep.subr.bf16.mxu0 0
    %1195 = vmatpush1.bf16.msra.mxu0 0
    %1196 = vmatprep.subr.bf16.mxu0 0
    %1197 = vmatpush1.bf16.msra.mxu0 0
    %1198 = vmatprep.subr.bf16.mxu0 0
    %1199 = vmatpush1.bf16.msra.mxu0 0
    %1200 = vmatprep.subr.bf16.mxu0 0
    %1201 = vmatpush1.bf16.msra.mxu0 0
    %1202 = vmatprep.subr.bf16.mxu0 0
    %1203 = vmatpush1.bf16.msra.mxu0 0
    %1204 = vmatprep.subr.bf16.mxu0 0
    %1205 = vmatpush1.bf16.msra.mxu0 0
    %1206 = vmatprep.subr.bf16.mxu0 0
    %1207 = vmatpush1.bf16.msra.mxu0 0
    %1208 = vmatprep.mubr.bf16.mxu0 0
    %1209 = vmatmul.mubr.bf16.gmra.mrb[0].mxu0 %v1131
    %v1210 = vpop.f32.mrb[0].mxu0
    %v1211 = vadd.f32 0.0, %v1210
    %v1212 = vpop.f32.mrb[0].mxu0
    %v1213 = vadd.f32 0.0, %v1212
    %v1214 = vpop.f32.mrb[0].mxu0
    %v1215 = vadd.f32 0.0, %v1214
    %v1216 = vpop.f32.mrb[0].mxu0
    %v1217 = vadd.f32 0.0, %v1216
    %1218 = vdwg.mxu0
    %1219 = vmatprep.subr.bf16.mxu0 %v1144
    %1220 = vmatpush1.bf16.msra.mxu0 %v1143
    %1221 = vmatprep.subr.bf16.mxu0 %v1146
    %1222 = vmatpush1.bf16.msra.mxu0 %v1145
    %1223 = vmatprep.subr.bf16.mxu0 %v1148
    %1224 = vmatpush1.bf16.msra.mxu0 %v1147
    %1225 = vmatprep.subr.bf16.mxu0 %v1150
    %1226 = vmatpush1.bf16.msra.mxu0 %v1149
    %1227 = vmatprep.subr.bf16.mxu0 %v1152
    %1228 = vmatpush1.bf16.msra.mxu0 %v1151
    %1229 = vmatprep.subr.bf16.mxu0 %v1154
    %1230 = vmatpush1.bf16.msra.mxu0 %v1153
    %1231 = vmatprep.subr.bf16.mxu0 %v1156
    %1232 = vmatpush1.bf16.msra.mxu0 %v1155
    %1233 = vmatprep.subr.bf16.mxu0 %v1158
    %1234 = vmatpush1.bf16.msra.mxu0 %v1157
    %1235 = vmatprep.subr.bf16.mxu0 0
    %1236 = vmatpush1.bf16.msra.mxu0 0
    %1237 = vmatprep.subr.bf16.mxu0 0
    %1238 = vmatpush1.bf16.msra.mxu0 0
    %1239 = vmatprep.subr.bf16.mxu0 0
    %1240 = vmatpush1.bf16.msra.mxu0 0
    %1241 = vmatprep.subr.bf16.mxu0 0
    %1242 = vmatpush1.bf16.msra.mxu0 0
    %1243 = vmatprep.subr.bf16.mxu0 0
    %1244 = vmatpush1.bf16.msra.mxu0 0
    %1245 = vmatprep.subr.bf16.mxu0 0
    %1246 = vmatpush1.bf16.msra.mxu0 0
    %1247 = vmatprep.subr.bf16.mxu0 0
    %1248 = vmatpush1.bf16.msra.mxu0 0
    %1249 = vmatprep.subr.bf16.mxu0 0
    %1250 = vmatpush1.bf16.msra.mxu0 0
    %1251 = vmatprep.mubr.bf16.mxu0 0
    %1252 = vmatmul.mubr.bf16.gmra.mrb[0].mxu0 %v1141
    %v1253 = vpop.f32.mrb[0].mxu0
    %v1254 = vadd.f32 %v1211, %v1253
    %v1255 = vpop.f32.mrb[0].mxu0
    %v1256 = vadd.f32 %v1213, %v1255
    %v1257 = vpop.f32.mrb[0].mxu0
    %v1258 = vadd.f32 %v1215, %v1257
    %v1259 = vpop.f32.mrb[0].mxu0
    %v1260 = vadd.f32 %v1217, %v1259
    %1261 = vdwg.mxu0
    %v1262 = vrot.slane %v1131, 1
    %v1264 = vsel %vm1040, %v1262, 0
    %s1266 = scalar_lea.vmem [#allocation2], 256
    %v1267 = vld [vmem:[%s1266] sm:$0xff]
    %v1268 = vld [vmem:[%s1266 + $0x8] sm:$0xff]
    %v1269 = vld [vmem:[%s1266 + $0x10] sm:$0xff]
    %v1270 = vld [vmem:[%s1266 + $0x18] sm:$0xff]
    %v1271 = vld [vmem:[%s1266 + $0x20] sm:$0xff]
    %v1272 = vld [vmem:[%s1266 + $0x28] sm:$0xff]
    %v1273 = vld [vmem:[%s1266 + $0x30] sm:$0xff]
    %v1274 = vld [vmem:[%s1266 + $0x38] sm:$0xff]
    %v1275 = vld [vmem:[%s1266 + $0x40] sm:$0xff]
    %v1276 = vld [vmem:[%s1266 + $0x48] sm:$0xff]
    %v1277 = vld [vmem:[%s1266 + $0x50] sm:$0xff]
    %v1278 = vld [vmem:[%s1266 + $0x58] sm:$0xff]
    %v1279 = vld [vmem:[%s1266 + $0x60] sm:$0xff]
    %v1280 = vld [vmem:[%s1266 + $0x68] sm:$0xff]
    %v1281 = vld [vmem:[%s1266 + $0x70] sm:$0xff]
    %v1282 = vld [vmem:[%s1266 + $0x78] sm:$0xff]
    %1283 = vmatprep.subr.bf16.mxu0 %v1268
    %1284 = vmatpush1.bf16.msra.mxu0 %v1267
    %1285 = vmatprep.subr.bf16.mxu0 %v1270
    %1286 = vmatpush1.bf16.msra.mxu0 %v1269
    %1287 = vmatprep.subr.bf16.mxu0 %v1272
    %1288 = vmatpush1.bf16.msra.mxu0 %v1271
    %1289 = vmatprep.subr.bf16.mxu0 %v1274
    %1290 = vmatpush1.bf16.msra.mxu0 %v1273
    %1291 = vmatprep.subr.bf16.mxu0 %v1276
    %1292 = vmatpush1.bf16.msra.mxu0 %v1275
    %1293 = vmatprep.subr.bf16.mxu0 %v1278
    %1294 = vmatpush1.bf16.msra.mxu0 %v1277
    %1295 = vmatprep.subr.bf16.mxu0 %v1280
    %1296 = vmatpush1.bf16.msra.mxu0 %v1279
    %1297 = vmatprep.subr.bf16.mxu0 %v1282
    %1298 = vmatpush1.bf16.msra.mxu0 %v1281
    %1299 = vmatprep.subr.bf16.mxu0 0
    %1300 = vmatpush1.bf16.msra.mxu0 0
    %1301 = vmatprep.subr.bf16.mxu0 0
    %1302 = vmatpush1.bf16.msra.mxu0 0
    %1303 = vmatprep.subr.bf16.mxu0 0
    %1304 = vmatpush1.bf16.msra.mxu0 0
    %1305 = vmatprep.subr.bf16.mxu0 0
    %1306 = vmatpush1.bf16.msra.mxu0 0
    %1307 = vmatprep.subr.bf16.mxu0 0
    %1308 = vmatpush1.bf16.msra.mxu0 0
    %1309 = vmatprep.subr.bf16.mxu0 0
    %1310 = vmatpush1.bf16.msra.mxu0 0
    %1311 = vmatprep.subr.bf16.mxu0 0
    %1312 = vmatpush1.bf16.msra.mxu0 0
    %1313 = vmatprep.subr.bf16.mxu0 0
    %1314 = vmatpush1.bf16.msra.mxu0 0
    %1315 = vmatprep.mubr.bf16.mxu0 0
    %1316 = vmatmul.mubr.bf16.gmra.mrb[0].mxu0 %v1264
    %v1317 = vpop.f32.mrb[0].mxu0
    %v1318 = vadd.f32 0.0, %v1317
    %v1319 = vpop.f32.mrb[0].mxu0
    %v1320 = vadd.f32 0.0, %v1319
    %v1321 = vpop.f32.mrb[0].mxu0
    %v1322 = vadd.f32 0.0, %v1321
    %v1323 = vpop.f32.mrb[0].mxu0
    %v1324 = vadd.f32 0.0, %v1323
    %1325 = vdwg.mxu0
    %v1326 = vadd.f32 %v1254, %v1318
    %v1327 = vadd.f32 %v1256, %v1320
    %v1328 = vadd.f32 %v1258, %v1322
    %v1329 = vadd.f32 %v1260, %v1324
    %v1331 = vlaneseq
    %v1332 = vshrl.u32 %v1331, 7
    %v1333 = vsub.s32 0, %v1332
    %v1334 = vrot.slane %v1137, %v1333
    %v1335 = vlaneseq
    %v1336 = vshrl.u32 %v1335, 7
    %v1337 = vsub.s32 1, %v1336
    %v1338 = vrot.slane %v1137, %v1337
    %v1341 = vadd.f32 %v1326, %v1334
    %v1342 = vadd.f32 %v1327, %v1338
    %v1343 = vadd.f32 %v1328, %v1334
    %v1344 = vadd.f32 %v1329, %v1338
    %v1345 = vmax.f32 %v1341, 0.0
    %v1346 = vmax.f32 %v1342, 0.0
    %v1347 = vmax.f32 %v1343, 0.0
    %v1348 = vmax.f32 %v1344, 0.0
    %v1349 = vpack.c.bf16 %v1347, %v1345
    %v1350 = vpack.c.bf16 %v1348, %v1346
    %s1351 = smul.u32 4, 256
    %s1352 = smul.u32 %s1351, 1
    %s1353 = sshll.u32 %s1352, 4
    %1354 = dma.done %s462, %s1353
    %v1357 = vrot.slane %v1349, 1
    %v1358 = vrot.slane %v1350, 1
    %v1361 = vrot.slane %v1349, 2
    %v1362 = vrot.slane %v1350, 2
    %v1365 = vrot.slane %v1349, 3
    %v1366 = vrot.slane %v1350, 3
    %v1369 = vrot.slane %v1349, 4
    %v1370 = vrot.slane %v1350, 4
    %v1373 = vrot.slane %v1349, 5
    %v1374 = vrot.slane %v1350, 5
    %v1377 = vrot.slane %v1349, 6
    %v1378 = vrot.slane %v1350, 6
    %v1381 = vrot.slane %v1349, 7
    %v1382 = vrot.slane %v1350, 7
    %v1385 = vld [vmem:[#allocation3] sm:$0xff]
    %v1386 = vld [vmem:[#allocation3 + $0x8] sm:$0xff]
    %v1387 = vld [vmem:[#allocation3 + $0x10] sm:$0xff]
    %v1388 = vld [vmem:[#allocation3 + $0x18] sm:$0xff]
    %v1389 = vld [vmem:[#allocation3 + $0x20] sm:$0xff]
    %v1390 = vld [vmem:[#allocation3 + $0x28] sm:$0xff]
    %v1391 = vld [vmem:[#allocation3 + $0x30] sm:$0xff]
    %v1392 = vld [vmem:[#allocation3 + $0x38] sm:$0xff]
    %v1393 = vld [vmem:[#allocation3 + $0x40] sm:$0xff]
    %v1394 = vld [vmem:[#allocation3 + $0x48] sm:$0xff]
    %v1395 = vld [vmem:[#allocation3 + $0x50] sm:$0xff]
    %v1396 = vld [vmem:[#allocation3 + $0x58] sm:$0xff]
    %v1397 = vld [vmem:[#allocation3 + $0x60] sm:$0xff]
    %v1398 = vld [vmem:[#allocation3 + $0x68] sm:$0xff]
    %v1399 = vld [vmem:[#allocation3 + $0x70] sm:$0xff]
    %v1400 = vld [vmem:[#allocation3 + $0x78] sm:$0xff]
    %v1401 = vld [vmem:[#allocation3 + $0x80] sm:$0xff]
    %v1402 = vld [vmem:[#allocation3 + $0x88] sm:$0xff]
    %v1403 = vld [vmem:[#allocation3 + $0x90] sm:$0xff]
    %v1404 = vld [vmem:[#allocation3 + $0x98] sm:$0xff]
    %v1405 = vld [vmem:[#allocation3 + $0xa0] sm:$0xff]
    %v1406 = vld [vmem:[#allocation3 + $0xa8] sm:$0xff]
    %v1407 = vld [vmem:[#allocation3 + $0xb0] sm:$0xff]
    %v1408 = vld [vmem:[#allocation3 + $0xb8] sm:$0xff]
    %v1409 = vld [vmem:[#allocation3 + $0xc0] sm:$0xff]
    %v1410 = vld [vmem:[#allocation3 + $0xc8] sm:$0xff]
    %v1411 = vld [vmem:[#allocation3 + $0xd0] sm:$0xff]
    %v1412 = vld [vmem:[#allocation3 + $0xd8] sm:$0xff]
    %v1413 = vld [vmem:[#allocation3 + $0xe0] sm:$0xff]
    %v1414 = vld [vmem:[#allocation3 + $0xe8] sm:$0xff]
    %v1415 = vld [vmem:[#allocation3 + $0xf0] sm:$0xff]
    %v1416 = vld [vmem:[#allocation3 + $0xf8] sm:$0xff]
    %v1417 = vld [vmem:[#allocation3 + $0x100] sm:$0xff]
    %v1418 = vld [vmem:[#allocation3 + $0x108] sm:$0xff]
    %v1419 = vld [vmem:[#allocation3 + $0x110] sm:$0xff]
    %v1420 = vld [vmem:[#allocation3 + $0x118] sm:$0xff]
    %v1421 = vld [vmem:[#allocation3 + $0x120] sm:$0xff]
    %v1422 = vld [vmem:[#allocation3 + $0x128] sm:$0xff]
    %v1423 = vld [vmem:[#allocation3 + $0x130] sm:$0xff]
    %v1424 = vld [vmem:[#allocation3 + $0x138] sm:$0xff]
    %v1425 = vld [vmem:[#allocation3 + $0x140] sm:$0xff]
    %v1426 = vld [vmem:[#allocation3 + $0x148] sm:$0xff]
    %v1427 = vld [vmem:[#allocation3 + $0x150] sm:$0xff]
    %v1428 = vld [vmem:[#allocation3 + $0x158] sm:$0xff]
    %v1429 = vld [vmem:[#allocation3 + $0x160] sm:$0xff]
    %v1430 = vld [vmem:[#allocation3 + $0x168] sm:$0xff]
    %v1431 = vld [vmem:[#allocation3 + $0x170] sm:$0xff]
    %v1432 = vld [vmem:[#allocation3 + $0x178] sm:$0xff]
    %v1433 = vld [vmem:[#allocation3 + $0x180] sm:$0xff]
    %v1434 = vld [vmem:[#allocation3 + $0x188] sm:$0xff]
    %v1435 = vld [vmem:[#allocation3 + $0x190] sm:$0xff]
    %v1436 = vld [vmem:[#allocation3 + $0x198] sm:$0xff]
    %v1437 = vld [vmem:[#allocation3 + $0x1a0] sm:$0xff]
    %v1438 = vld [vmem:[#allocation3 + $0x1a8] sm:$0xff]
    %v1439 = vld [vmem:[#allocation3 + $0x1b0] sm:$0xff]
    %v1440 = vld [vmem:[#allocation3 + $0x1b8] sm:$0xff]
    %v1441 = vld [vmem:[#allocation3 + $0x1c0] sm:$0xff]
    %v1442 = vld [vmem:[#allocation3 + $0x1c8] sm:$0xff]
    %v1443 = vld [vmem:[#allocation3 + $0x1d0] sm:$0xff]
    %v1444 = vld [vmem:[#allocation3 + $0x1d8] sm:$0xff]
    %v1445 = vld [vmem:[#allocation3 + $0x1e0] sm:$0xff]
    %v1446 = vld [vmem:[#allocation3 + $0x1e8] sm:$0xff]
    %v1447 = vld [vmem:[#allocation3 + $0x1f0] sm:$0xff]
    %v1448 = vld [vmem:[#allocation3 + $0x1f8] sm:$0xff]
    %v1449 = vld [vmem:[#allocation3 + $0x200] sm:$0xff]
    %v1450 = vld [vmem:[#allocation3 + $0x208] sm:$0xff]
    %v1451 = vld [vmem:[#allocation3 + $0x210] sm:$0xff]
    %v1452 = vld [vmem:[#allocation3 + $0x218] sm:$0xff]
    %v1453 = vld [vmem:[#allocation3 + $0x220] sm:$0xff]
    %v1454 = vld [vmem:[#allocation3 + $0x228] sm:$0xff]
    %v1455 = vld [vmem:[#allocation3 + $0x230] sm:$0xff]
    %v1456 = vld [vmem:[#allocation3 + $0x238] sm:$0xff]
    %v1457 = vld [vmem:[#allocation3 + $0x240] sm:$0xff]
    %v1458 = vld [vmem:[#allocation3 + $0x248] sm:$0xff]
    %v1459 = vld [vmem:[#allocation3 + $0x250] sm:$0xff]
    %v1460 = vld [vmem:[#allocation3 + $0x258] sm:$0xff]
    %v1461 = vld [vmem:[#allocation3 + $0x260] sm:$0xff]
    %v1462 = vld [vmem:[#allocation3 + $0x268] sm:$0xff]
    %v1463 = vld [vmem:[#allocation3 + $0x270] sm:$0xff]
    %v1464 = vld [vmem:[#allocation3 + $0x278] sm:$0xff]
    %v1465 = vld [vmem:[#allocation3 + $0x280] sm:$0xff]
    %v1466 = vld [vmem:[#allocation3 + $0x288] sm:$0xff]
    %v1467 = vld [vmem:[#allocation3 + $0x290] sm:$0xff]
    %v1468 = vld [vmem:[#allocation3 + $0x298] sm:$0xff]
    %v1469 = vld [vmem:[#allocation3 + $0x2a0] sm:$0xff]
    %v1470 = vld [vmem:[#allocation3 + $0x2a8] sm:$0xff]
    %v1471 = vld [vmem:[#allocation3 + $0x2b0] sm:$0xff]
    %v1472 = vld [vmem:[#allocation3 + $0x2b8] sm:$0xff]
    %v1473 = vld [vmem:[#allocation3 + $0x2c0] sm:$0xff]
    %v1474 = vld [vmem:[#allocation3 + $0x2c8] sm:$0xff]
    %v1475 = vld [vmem:[#allocation3 + $0x2d0] sm:$0xff]
    %v1476 = vld [vmem:[#allocation3 + $0x2d8] sm:$0xff]
    %v1477 = vld [vmem:[#allocation3 + $0x2e0] sm:$0xff]
    %v1478 = vld [vmem:[#allocation3 + $0x2e8] sm:$0xff]
    %v1479 = vld [vmem:[#allocation3 + $0x2f0] sm:$0xff]
    %v1480 = vld [vmem:[#allocation3 + $0x2f8] sm:$0xff]
    %v1481 = vld [vmem:[#allocation3 + $0x300] sm:$0xff]
    %v1482 = vld [vmem:[#allocation3 + $0x308] sm:$0xff]
    %v1483 = vld [vmem:[#allocation3 + $0x310] sm:$0xff]
    %v1484 = vld [vmem:[#allocation3 + $0x318] sm:$0xff]
    %v1485 = vld [vmem:[#allocation3 + $0x320] sm:$0xff]
    %v1486 = vld [vmem:[#allocation3 + $0x328] sm:$0xff]
    %v1487 = vld [vmem:[#allocation3 + $0x330] sm:$0xff]
    %v1488 = vld [vmem:[#allocation3 + $0x338] sm:$0xff]
    %v1489 = vld [vmem:[#allocation3 + $0x340] sm:$0xff]
    %v1490 = vld [vmem:[#allocation3 + $0x348] sm:$0xff]
    %v1491 = vld [vmem:[#allocation3 + $0x350] sm:$0xff]
    %v1492 = vld [vmem:[#allocation3 + $0x358] sm:$0xff]
    %v1493 = vld [vmem:[#allocation3 + $0x360] sm:$0xff]
    %v1494 = vld [vmem:[#allocation3 + $0x368] sm:$0xff]
    %v1495 = vld [vmem:[#allocation3 + $0x370] sm:$0xff]
    %v1496 = vld [vmem:[#allocation3 + $0x378] sm:$0xff]
    %v1497 = vld [vmem:[#allocation3 + $0x380] sm:$0xff]
    %v1498 = vld [vmem:[#allocation3 + $0x388] sm:$0xff]
    %v1499 = vld [vmem:[#allocation3 + $0x390] sm:$0xff]
    %v1500 = vld [vmem:[#allocation3 + $0x398] sm:$0xff]
    %v1501 = vld [vmem:[#allocation3 + $0x3a0] sm:$0xff]
    %v1502 = vld [vmem:[#allocation3 + $0x3a8] sm:$0xff]
    %v1503 = vld [vmem:[#allocation3 + $0x3b0] sm:$0xff]
    %v1504 = vld [vmem:[#allocation3 + $0x3b8] sm:$0xff]
    %v1505 = vld [vmem:[#allocation3 + $0x3c0] sm:$0xff]
    %v1506 = vld [vmem:[#allocation3 + $0x3c8] sm:$0xff]
    %v1507 = vld [vmem:[#allocation3 + $0x3d0] sm:$0xff]
    %v1508 = vld [vmem:[#allocation3 + $0x3d8] sm:$0xff]
    %v1509 = vld [vmem:[#allocation3 + $0x3e0] sm:$0xff]
    %v1510 = vld [vmem:[#allocation3 + $0x3e8] sm:$0xff]
    %v1511 = vld [vmem:[#allocation3 + $0x3f0] sm:$0xff]
    %v1512 = vld [vmem:[#allocation3 + $0x3f8] sm:$0xff]
    %v1513 = vld [vmem:[%s6] sm:$0x1]
    %v1515 = vlaneseq
    %v1516 = vshrl.u32 %v1515, 7
    %v1517 = vsub.s32 0, %v1516
    %v1518 = vrot.slane %v1513, %v1517
    %1520 = vmatprep.subr.bf16.mxu0 0
    %1521 = vmatpush1.bf16.msra.mxu0 %v1385
    %1522 = vmatprep.subr.bf16.mxu0 0
    %1523 = vmatpush1.bf16.msra.mxu0 %v1386
    %1524 = vmatprep.subr.bf16.mxu0 0
    %1525 = vmatpush1.bf16.msra.mxu0 %v1387
    %1526 = vmatprep.subr.bf16.mxu0 0
    %1527 = vmatpush1.bf16.msra.mxu0 %v1388
    %1528 = vmatprep.subr.bf16.mxu0 0
    %1529 = vmatpush1.bf16.msra.mxu0 %v1389
    %1530 = vmatprep.subr.bf16.mxu0 0
    %1531 = vmatpush1.bf16.msra.mxu0 %v1390
    %1532 = vmatprep.subr.bf16.mxu0 0
    %1533 = vmatpush1.bf16.msra.mxu0 %v1391
    %1534 = vmatprep.subr.bf16.mxu0 0
    %1535 = vmatpush1.bf16.msra.mxu0 %v1392
    %1536 = vmatprep.subr.bf16.mxu0 0
    %1537 = vmatpush1.bf16.msra.mxu0 %v1393
    %1538 = vmatprep.subr.bf16.mxu0 0
    %1539 = vmatpush1.bf16.msra.mxu0 %v1394
    %1540 = vmatprep.subr.bf16.mxu0 0
    %1541 = vmatpush1.bf16.msra.mxu0 %v1395
    %1542 = vmatprep.subr.bf16.mxu0 0
    %1543 = vmatpush1.bf16.msra.mxu0 %v1396
    %1544 = vmatprep.subr.bf16.mxu0 0
    %1545 = vmatpush1.bf16.msra.mxu0 %v1397
    %1546 = vmatprep.subr.bf16.mxu0 0
    %1547 = vmatpush1.bf16.msra.mxu0 %v1398
    %1548 = vmatprep.subr.bf16.mxu0 0
    %1549 = vmatpush1.bf16.msra.mxu0 %v1399
    %1550 = vmatprep.subr.bf16.mxu0 0
    %1551 = vmatpush1.bf16.msra.mxu0 %v1400
    %1552 = vmatprep.mubr.bf16.mxu0 %v1350
    %1553 = vmatmul.mubr.bf16.gmra.mrb[0].mxu0 %v1349
    %v1554 = vpop.f32.mrb[0].mxu0
    %v1555 = vadd.f32 %v1518, %v1554
    %v1556 = vpop.f32.mrb[0].mxu0
    %v1557 = vpop.f32.mrb[0].mxu0
    %v1558 = vpop.f32.mrb[0].mxu0
    %1559 = vdwg.mxu0
    %1560 = vmatprep.subr.bf16.mxu0 0
    %1561 = vmatpush1.bf16.msra.mxu0 %v1401
    %1562 = vmatprep.subr.bf16.mxu0 0
    %1563 = vmatpush1.bf16.msra.mxu0 %v1402
    %1564 = vmatprep.subr.bf16.mxu0 0
    %1565 = vmatpush1.bf16.msra.mxu0 %v1403
    %1566 = vmatprep.subr.bf16.mxu0 0
    %1567 = vmatpush1.bf16.msra.mxu0 %v1404
    %1568 = vmatprep.subr.bf16.mxu0 0
    %1569 = vmatpush1.bf16.msra.mxu0 %v1405
    %1570 = vmatprep.subr.bf16.mxu0 0
    %1571 = vmatpush1.bf16.msra.mxu0 %v1406
    %1572 = vmatprep.subr.bf16.mxu0 0
    %1573 = vmatpush1.bf16.msra.mxu0 %v1407
    %1574 = vmatprep.subr.bf16.mxu0 0
    %1575 = vmatpush1.bf16.msra.mxu0 %v1408
    %1576 = vmatprep.subr.bf16.mxu0 0
    %1577 = vmatpush1.bf16.msra.mxu0 %v1409
    %1578 = vmatprep.subr.bf16.mxu0 0
    %1579 = vmatpush1.bf16.msra.mxu0 %v1410
    %1580 = vmatprep.subr.bf16.mxu0 0
    %1581 = vmatpush1.bf16.msra.mxu0 %v1411
    %1582 = vmatprep.subr.bf16.mxu0 0
    %1583 = vmatpush1.bf16.msra.mxu0 %v1412
    %1584 = vmatprep.subr.bf16.mxu0 0
    %1585 = vmatpush1.bf16.msra.mxu0 %v1413
    %1586 = vmatprep.subr.bf16.mxu0 0
    %1587 = vmatpush1.bf16.msra.mxu0 %v1414
    %1588 = vmatprep.subr.bf16.mxu0 0
    %1589 = vmatpush1.bf16.msra.mxu0 %v1415
    %1590 = vmatprep.subr.bf16.mxu0 0
    %1591 = vmatpush1.bf16.msra.mxu0 %v1416
    %1592 = vmatprep.mubr.bf16.mxu0 %v1358
    %1593 = vmatmul.mubr.bf16.gmra.mrb[0].mxu0 %v1357
    %v1594 = vpop.f32.mrb[0].mxu0
    %v1595 = vadd.f32 %v1555, %v1594
    %v1596 = vpop.f32.mrb[0].mxu0
    %v1597 = vpop.f32.mrb[0].mxu0
    %v1598 = vpop.f32.mrb[0].mxu0
    %1599 = vdwg.mxu0
    %1600 = vmatprep.subr.bf16.mxu0 0
    %1601 = vmatpush1.bf16.msra.mxu0 %v1417
    %1602 = vmatprep.subr.bf16.mxu0 0
    %1603 = vmatpush1.bf16.msra.mxu0 %v1418
    %1604 = vmatprep.subr.bf16.mxu0 0
    %1605 = vmatpush1.bf16.msra.mxu0 %v1419
    %1606 = vmatprep.subr.bf16.mxu0 0
    %1607 = vmatpush1.bf16.msra.mxu0 %v1420
    %1608 = vmatprep.subr.bf16.mxu0 0
    %1609 = vmatpush1.bf16.msra.mxu0 %v1421
    %1610 = vmatprep.subr.bf16.mxu0 0
    %1611 = vmatpush1.bf16.msra.mxu0 %v1422
    %1612 = vmatprep.subr.bf16.mxu0 0
    %1613 = vmatpush1.bf16.msra.mxu0 %v1423
    %1614 = vmatprep.subr.bf16.mxu0 0
    %1615 = vmatpush1.bf16.msra.mxu0 %v1424
    %1616 = vmatprep.subr.bf16.mxu0 0
    %1617 = vmatpush1.bf16.msra.mxu0 %v1425
    %1618 = vmatprep.subr.bf16.mxu0 0
    %1619 = vmatpush1.bf16.msra.mxu0 %v1426
    %1620 = vmatprep.subr.bf16.mxu0 0
    %1621 = vmatpush1.bf16.msra.mxu0 %v1427
    %1622 = vmatprep.subr.bf16.mxu0 0
    %1623 = vmatpush1.bf16.msra.mxu0 %v1428
    %1624 = vmatprep.subr.bf16.mxu0 0
    %1625 = vmatpush1.bf16.msra.mxu0 %v1429
    %1626 = vmatprep.subr.bf16.mxu0 0
    %1627 = vmatpush1.bf16.msra.mxu0 %v1430
    %1628 = vmatprep.subr.bf16.mxu0 0
    %1629 = vmatpush1.bf16.msra.mxu0 %v1431
    %1630 = vmatprep.subr.bf16.mxu0 0
    %1631 = vmatpush1.bf16.msra.mxu0 %v1432
    %1632 = vmatprep.mubr.bf16.mxu0 %v1362
    %1633 = vmatmul.mubr.bf16.gmra.mrb[0].mxu0 %v1361
    %v1634 = vpop.f32.mrb[0].mxu0
    %v1635 = vadd.f32 %v1595, %v1634
    %v1636 = vpop.f32.mrb[0].mxu0
    %v1637 = vpop.f32.mrb[0].mxu0
    %v1638 = vpop.f32.mrb[0].mxu0
    %1639 = vdwg.mxu0
    %1640 = vmatprep.subr.bf16.mxu0 0
    %1641 = vmatpush1.bf16.msra.mxu0 %v1433
    %1642 = vmatprep.subr.bf16.mxu0 0
    %1643 = vmatpush1.bf16.msra.mxu0 %v1434
    %1644 = vmatprep.subr.bf16.mxu0 0
    %1645 = vmatpush1.bf16.msra.mxu0 %v1435
    %1646 = vmatprep.subr.bf16.mxu0 0
    %1647 = vmatpush1.bf16.msra.mxu0 %v1436
    %1648 = vmatprep.subr.bf16.mxu0 0
    %1649 = vmatpush1.bf16.msra.mxu0 %v1437
    %1650 = vmatprep.subr.bf16.mxu0 0
    %1651 = vmatpush1.bf16.msra.mxu0 %v1438
    %1652 = vmatprep.subr.bf16.mxu0 0
    %1653 = vmatpush1.bf16.msra.mxu0 %v1439
    %1654 = vmatprep.subr.bf16.mxu0 0
    %1655 = vmatpush1.bf16.msra.mxu0 %v1440
    %1656 = vmatprep.subr.bf16.mxu0 0
    %1657 = vmatpush1.bf16.msra.mxu0 %v1441
    %1658 = vmatprep.subr.bf16.mxu0 0
    %1659 = vmatpush1.bf16.msra.mxu0 %v1442
    %1660 = vmatprep.subr.bf16.mxu0 0
    %1661 = vmatpush1.bf16.msra.mxu0 %v1443
    %1662 = vmatprep.subr.bf16.mxu0 0
    %1663 = vmatpush1.bf16.msra.mxu0 %v1444
    %1664 = vmatprep.subr.bf16.mxu0 0
    %1665 = vmatpush1.bf16.msra.mxu0 %v1445
    %1666 = vmatprep.subr.bf16.mxu0 0
    %1667 = vmatpush1.bf16.msra.mxu0 %v1446
    %1668 = vmatprep.subr.bf16.mxu0 0
    %1669 = vmatpush1.bf16.msra.mxu0 %v1447
    %1670 = vmatprep.subr.bf16.mxu0 0
    %1671 = vmatpush1.bf16.msra.mxu0 %v1448
    %1672 = vmatprep.mubr.bf16.mxu0 %v1366
    %1673 = vmatmul.mubr.bf16.gmra.mrb[0].mxu0 %v1365
    %v1674 = vpop.f32.mrb[0].mxu0
    %v1675 = vadd.f32 %v1635, %v1674
    %v1676 = vpop.f32.mrb[0].mxu0
    %v1677 = vpop.f32.mrb[0].mxu0
    %v1678 = vpop.f32.mrb[0].mxu0
    %1679 = vdwg.mxu0
    %1680 = vmatprep.subr.bf16.mxu0 0
    %1681 = vmatpush1.bf16.msra.mxu0 %v1449
    %1682 = vmatprep.subr.bf16.mxu0 0
    %1683 = vmatpush1.bf16.msra.mxu0 %v1450
    %1684 = vmatprep.subr.bf16.mxu0 0
    %1685 = vmatpush1.bf16.msra.mxu0 %v1451
    %1686 = vmatprep.subr.bf16.mxu0 0
    %1687 = vmatpush1.bf16.msra.mxu0 %v1452
    %1688 = vmatprep.subr.bf16.mxu0 0
    %1689 = vmatpush1.bf16.msra.mxu0 %v1453
    %1690 = vmatprep.subr.bf16.mxu0 0
    %1691 = vmatpush1.bf16.msra.mxu0 %v1454
    %1692 = vmatprep.subr.bf16.mxu0 0
    %1693 = vmatpush1.bf16.msra.mxu0 %v1455
    %1694 = vmatprep.subr.bf16.mxu0 0
    %1695 = vmatpush1.bf16.msra.mxu0 %v1456
    %1696 = vmatprep.subr.bf16.mxu0 0
    %1697 = vmatpush1.bf16.msra.mxu0 %v1457
    %1698 = vmatprep.subr.bf16.mxu0 0
    %1699 = vmatpush1.bf16.msra.mxu0 %v1458
    %1700 = vmatprep.subr.bf16.mxu0 0
    %1701 = vmatpush1.bf16.msra.mxu0 %v1459
    %1702 = vmatprep.subr.bf16.mxu0 0
    %1703 = vmatpush1.bf16.msra.mxu0 %v1460
    %1704 = vmatprep.subr.bf16.mxu0 0
    %1705 = vmatpush1.bf16.msra.mxu0 %v1461
    %1706 = vmatprep.subr.bf16.mxu0 0
    %1707 = vmatpush1.bf16.msra.mxu0 %v1462
    %1708 = vmatprep.subr.bf16.mxu0 0
    %1709 = vmatpush1.bf16.msra.mxu0 %v1463
    %1710 = vmatprep.subr.bf16.mxu0 0
    %1711 = vmatpush1.bf16.msra.mxu0 %v1464
    %1712 = vmatprep.mubr.bf16.mxu0 %v1370
    %1713 = vmatmul.mubr.bf16.gmra.mrb[0].mxu0 %v1369
    %v1714 = vpop.f32.mrb[0].mxu0
    %v1715 = vadd.f32 %v1675, %v1714
    %v1716 = vpop.f32.mrb[0].mxu0
    %v1717 = vpop.f32.mrb[0].mxu0
    %v1718 = vpop.f32.mrb[0].mxu0
    %1719 = vdwg.mxu0
    %1720 = vmatprep.subr.bf16.mxu0 0
    %1721 = vmatpush1.bf16.msra.mxu0 %v1465
    %1722 = vmatprep.subr.bf16.mxu0 0
    %1723 = vmatpush1.bf16.msra.mxu0 %v1466
    %1724 = vmatprep.subr.bf16.mxu0 0
    %1725 = vmatpush1.bf16.msra.mxu0 %v1467
    %1726 = vmatprep.subr.bf16.mxu0 0
    %1727 = vmatpush1.bf16.msra.mxu0 %v1468
    %1728 = vmatprep.subr.bf16.mxu0 0
    %1729 = vmatpush1.bf16.msra.mxu0 %v1469
    %1730 = vmatprep.subr.bf16.mxu0 0
    %1731 = vmatpush1.bf16.msra.mxu0 %v1470
    %1732 = vmatprep.subr.bf16.mxu0 0
    %1733 = vmatpush1.bf16.msra.mxu0 %v1471
    %1734 = vmatprep.subr.bf16.mxu0 0
    %1735 = vmatpush1.bf16.msra.mxu0 %v1472
    %1736 = vmatprep.subr.bf16.mxu0 0
    %1737 = vmatpush1.bf16.msra.mxu0 %v1473
    %1738 = vmatprep.subr.bf16.mxu0 0
    %1739 = vmatpush1.bf16.msra.mxu0 %v1474
    %1740 = vmatprep.subr.bf16.mxu0 0
    %1741 = vmatpush1.bf16.msra.mxu0 %v1475
    %1742 = vmatprep.subr.bf16.mxu0 0
    %1743 = vmatpush1.bf16.msra.mxu0 %v1476
    %1744 = vmatprep.subr.bf16.mxu0 0
    %1745 = vmatpush1.bf16.msra.mxu0 %v1477
    %1746 = vmatprep.subr.bf16.mxu0 0
    %1747 = vmatpush1.bf16.msra.mxu0 %v1478
    %1748 = vmatprep.subr.bf16.mxu0 0
    %1749 = vmatpush1.bf16.msra.mxu0 %v1479
    %1750 = vmatprep.subr.bf16.mxu0 0
    %1751 = vmatpush1.bf16.msra.mxu0 %v1480
    %1752 = vmatprep.mubr.bf16.mxu0 %v1374
    %1753 = vmatmul.mubr.bf16.gmra.mrb[0].mxu0 %v1373
    %v1754 = vpop.f32.mrb[0].mxu0
    %v1755 = vadd.f32 %v1715, %v1754
    %v1756 = vpop.f32.mrb[0].mxu0
    %v1757 = vpop.f32.mrb[0].mxu0
    %v1758 = vpop.f32.mrb[0].mxu0
    %1759 = vdwg.mxu0
    %1760 = vmatprep.subr.bf16.mxu0 0
    %1761 = vmatpush1.bf16.msra.mxu0 %v1481
    %1762 = vmatprep.subr.bf16.mxu0 0
    %1763 = vmatpush1.bf16.msra.mxu0 %v1482
    %1764 = vmatprep.subr.bf16.mxu0 0
    %1765 = vmatpush1.bf16.msra.mxu0 %v1483
    %1766 = vmatprep.subr.bf16.mxu0 0
    %1767 = vmatpush1.bf16.msra.mxu0 %v1484
    %1768 = vmatprep.subr.bf16.mxu0 0
    %1769 = vmatpush1.bf16.msra.mxu0 %v1485
    %1770 = vmatprep.subr.bf16.mxu0 0
    %1771 = vmatpush1.bf16.msra.mxu0 %v1486
    %1772 = vmatprep.subr.bf16.mxu0 0
    %1773 = vmatpush1.bf16.msra.mxu0 %v1487
    %1774 = vmatprep.subr.bf16.mxu0 0
    %1775 = vmatpush1.bf16.msra.mxu0 %v1488
    %1776 = vmatprep.subr.bf16.mxu0 0
    %1777 = vmatpush1.bf16.msra.mxu0 %v1489
    %1778 = vmatprep.subr.bf16.mxu0 0
    %1779 = vmatpush1.bf16.msra.mxu0 %v1490
    %1780 = vmatprep.subr.bf16.mxu0 0
    %1781 = vmatpush1.bf16.msra.mxu0 %v1491
    %1782 = vmatprep.subr.bf16.mxu0 0
    %1783 = vmatpush1.bf16.msra.mxu0 %v1492
    %1784 = vmatprep.subr.bf16.mxu0 0
    %1785 = vmatpush1.bf16.msra.mxu0 %v1493
    %1786 = vmatprep.subr.bf16.mxu0 0
    %1787 = vmatpush1.bf16.msra.mxu0 %v1494
    %1788 = vmatprep.subr.bf16.mxu0 0
    %1789 = vmatpush1.bf16.msra.mxu0 %v1495
    %1790 = vmatprep.subr.bf16.mxu0 0
    %1791 = vmatpush1.bf16.msra.mxu0 %v1496
    %1792 = vmatprep.mubr.bf16.mxu0 %v1378
    %1793 = vmatmul.mubr.bf16.gmra.mrb[0].mxu0 %v1377
    %v1794 = vpop.f32.mrb[0].mxu0
    %v1795 = vadd.f32 %v1755, %v1794
    %v1796 = vpop.f32.mrb[0].mxu0
    %v1797 = vpop.f32.mrb[0].mxu0
    %v1798 = vpop.f32.mrb[0].mxu0
    %1799 = vdwg.mxu0
    %1800 = vmatprep.subr.bf16.mxu0 0
    %1801 = vmatpush1.bf16.msra.mxu0 %v1497
    %1802 = vmatprep.subr.bf16.mxu0 0
    %1803 = vmatpush1.bf16.msra.mxu0 %v1498
    %1804 = vmatprep.subr.bf16.mxu0 0
    %1805 = vmatpush1.bf16.msra.mxu0 %v1499
    %1806 = vmatprep.subr.bf16.mxu0 0
    %1807 = vmatpush1.bf16.msra.mxu0 %v1500
    %1808 = vmatprep.subr.bf16.mxu0 0
    %1809 = vmatpush1.bf16.msra.mxu0 %v1501
    %1810 = vmatprep.subr.bf16.mxu0 0
    %1811 = vmatpush1.bf16.msra.mxu0 %v1502
    %1812 = vmatprep.subr.bf16.mxu0 0
    %1813 = vmatpush1.bf16.msra.mxu0 %v1503
    %1814 = vmatprep.subr.bf16.mxu0 0
    %1815 = vmatpush1.bf16.msra.mxu0 %v1504
    %1816 = vmatprep.subr.bf16.mxu0 0
    %1817 = vmatpush1.bf16.msra.mxu0 %v1505
    %1818 = vmatprep.subr.bf16.mxu0 0
    %1819 = vmatpush1.bf16.msra.mxu0 %v1506
    %1820 = vmatprep.subr.bf16.mxu0 0
    %1821 = vmatpush1.bf16.msra.mxu0 %v1507
    %1822 = vmatprep.subr.bf16.mxu0 0
    %1823 = vmatpush1.bf16.msra.mxu0 %v1508
    %1824 = vmatprep.subr.bf16.mxu0 0
    %1825 = vmatpush1.bf16.msra.mxu0 %v1509
    %1826 = vmatprep.subr.bf16.mxu0 0
    %1827 = vmatpush1.bf16.msra.mxu0 %v1510
    %1828 = vmatprep.subr.bf16.mxu0 0
    %1829 = vmatpush1.bf16.msra.mxu0 %v1511
    %1830 = vmatprep.subr.bf16.mxu0 0
    %1831 = vmatpush1.bf16.msra.mxu0 %v1512
    %1832 = vmatprep.mubr.bf16.mxu0 %v1382
    %1833 = vmatmul.mubr.bf16.gmra.mrb[0].mxu0 %v1381
    %v1834 = vpop.f32.mrb[0].mxu0
    %v1835 = vadd.f32 %v1795, %v1834
    %v1836 = vpop.f32.mrb[0].mxu0
    %v1837 = vpop.f32.mrb[0].mxu0
    %v1838 = vpop.f32.mrb[0].mxu0
    %1839 = vdwg.mxu0
    %v1840 = vmax.f32 %v1835, 0.0
    %vm1841 = vcmask 517120
    %1842 = vst.msk [vmem:[#allocation5] sm:$0x3] %vm1841, %v1840
    // Predicated region
    $region101: #{_lambda_.1} parent=1 // pred_check
      _
    $region102: #{_lambda_.1} parent=1 // pred_check_branch
      %1844 = sbr.rel (0) target = $region104
    $region103: #{_lambda_.1} parent=1 // pred_region
      %s1846 = ssub.s32 32, 32
      %1847 = vsyncadd [#allocation6], %s1846
      %s1849 = sshll.u32 [#allocation5], 4
      %s1850 = int_to_ptr.vmem [resolvable:$true] %s1849
      %1852 = dma.vmem_to_hbm [thread:$0]  %s1850, 32, %s9, [#allocation6]
    $region104: #{_lambda_.1} parent=1 // pred_fallthru
      _
    // Predicated region
    $region105: #{_lambda_.1} parent=1 // pred_check
      _
    $region106: #{_lambda_.1} parent=1 // pred_check_branch
      %1854 = sbr.rel (0) target = $region108
    $region107: #{_lambda_.1} parent=1 // pred_region
      %1855 = dma.done [#allocation6], 32
    $region108: #{_lambda_.1} parent=1 // pred_fallthru
      _
    %1856 = vsyncpa [#allocation6], 1
  %1857 = vsyncmov [#allocation4]
  %s1858 = vpop.sfrf %1857
  %p1859 = scmp.eq.s32.totalorder %s1858, 0
  %p1860 = pneg %p1859
  %1862 = shalt.err (%p1860)
  %s1863 = scalar_lea.sflag [#allocation4], 1
  %1864 = vsyncmov %s1863
  %s1865 = vpop.sfrf %1864
  %p1866 = scmp.eq.s32.totalorder %s1865, 0
  %p1867 = pneg %p1866
  %1869 = shalt.err (%p1867)

</llo_original>
